<compile_context>
chip_gen: v6e
topology: v6e:2x2x1
jax: 0.10.0
libtpu: 0.0.40
codegen_flags: <defaults>
</compile_context>

<pallas_src>
import functools
import math

import jax
import jax.numpy as jnp
from jax import lax
from jax.experimental import pallas as pl
from jax.experimental.pallas import tpu as pltpu

# ---- constants from the reference module ----
MAX_BPM = 200
MIN_BPM = 50
BPM_RANGE = MAX_BPM - MIN_BPM
N_BEAT_FRACTIONS = 10
N_MODES = 2
NEG_SLOPE = 0.01   # F.leaky_relu default
_LANE = 128


def get_mean_size(*values, factor=1):
    mean = (sum(values) / len(values)) * factor
    return math.ceil(mean)


def _lrelu(x):
    return jnp.where(x >= 0, x, NEG_SLOPE * x)


# ---------------------------------------------------------------------------
# Fused Pallas kernel
# ---------------------------------------------------------------------------
def _lstm_last(x2d, n, t_len, w_ih, w_hh, b):
    """LSTM over a time-major flattened (t_len * n, I) input; returns (n, H).

    Rows of x2d are TIME-major: row = step * n + seq.  Weights are gate-packed
    along lanes: w_ih (I, 4H), w_hh (H, 4H), b (1, 4H), gate order (i, f, o, g).
    """
    h4 = w_hh.shape[-1]
    h_size = h4 // 4

    # Hoisted input projection: ONE matmul for all gates and all steps,
    # done outside the serial recurrence.  Kept as a value (fits in vregs at
    # these sizes); spill to a VMEM scratch only if n*t_len grows large.
    gx = jnp.dot(x2d, w_ih, preferred_element_type=jnp.float32) + b  # (t*n,4H)

    h = jnp.zeros((n, h_size), jnp.float32)
    c = jnp.zeros((n, h_size), jnp.float32)

    # Fully unrolled recurrence (t_len is small & static) so the LLO scheduler
    # can interleave the single MXU push, 2 EUP pushes and VPU gate math.
    # TODO(synk): for the tiny beats LSTM (H=5) a VPU broadcast-MAC over the 5
    # contraction terms may beat the MXU push/pop latency; verify with a
    # bundle dump before committing.
    for step in range(t_len):
        slab = gx[step * n:(step + 1) * n]            # contiguous, aligned
        gates = slab + jnp.dot(h, w_hh, preferred_element_type=jnp.float32)
        sig = jax.nn.sigmoid(gates[:, :3 * h_size])   # 1 EUP push: i|f|o
        g_gate = jnp.tanh(gates[:, 3 * h_size:])      # 1 EUP push: g
        i_gate = sig[:, :h_size]
        f_gate = sig[:, h_size:2 * h_size]
        o_gate = sig[:, 2 * h_size:]
        c = f_gate * c + i_gate * g_gate
        h = o_gate * jnp.tanh(c)                      # 1 EUP push
    return h


def _song_info_kernel(x_beats_ref, style_ref,
                      beats_wih_ref, beats_whh_ref, beats_b_ref,
                      bars_wih_ref, bars_whh_ref, bars_b_ref,
                      w1_ref, b1_ref, w2_ref, b2_ref,
                      out_ref,
                      *, batch, n_bars, n_beats, n_instruments):
    n_seq = n_bars * batch

    # ---- rhythm features: Distributed(beats_lstm) -> last beat ->
    #      bars_lstm -> last bar.  Intermediates stay on-chip. ----
    h_beats = _lstm_last(x_beats_ref[...], n_seq, n_beats,
                         beats_wih_ref[...], beats_whh_ref[...],
                         beats_b_ref[...])             # (n_bars*batch, Hb)
    # h_beats rows are (bar*batch + b): already time-major for the bars LSTM.
    rhythm_features = _lstm_last(h_beats, batch, n_bars,
                                 bars_wih_ref[...], bars_whh_ref[...],
                                 bars_b_ref[...])      # (batch, R)

    # ---- three heads fused into two matmuls via packed weights ----
    x_heads = jnp.concatenate([style_ref[...], rhythm_features], axis=1)
    h1 = _lrelu(jnp.dot(x_heads, w1_ref[...],
                        preferred_element_type=jnp.float32) + b1_ref[...])
    logits = (jnp.dot(h1, w2_ref[...], preferred_element_type=jnp.float32)
              + b2_ref[...])                           # (B, 128), lane-dense

    # bpm column gets sigmoid * range + min; all other columns are raw logits.
    # sigmoid over all 128 lanes is a single EUP push; garbage in the padded
    # lanes is sliced off by the wrapper.
    col = lax.broadcasted_iota(jnp.int32, logits.shape, 1)
    bpm_col = n_instruments + N_MODES
    out_ref[...] = jnp.where(col == bpm_col,
                             jax.nn.sigmoid(logits) * BPM_RANGE + MIN_BPM,
                             logits)


# ---------------------------------------------------------------------------
# Wrapper
# ---------------------------------------------------------------------------
def song_info_forward(params, style, rhythm, *, n_instruments):
    """Equivalent of SongInfoModel.forward(style, rhythm) in ONE pallas_call."""
    batch, n_bars, n_beats, nbf, rsz = rhythm.shape
    # squash_dims(rhythm, -2) + Distributed(depth=1) flattening, plus a
    # host-side transpose to time-major (beat, bar, batch) so the kernel's
    # per-step gx read is a contiguous sublane-aligned slab.  XLA absorbs the
    # transpose into the HBM->VMEM copy.
    x_beats = jnp.transpose(rhythm, (2, 1, 0, 3, 4)).reshape(
        n_beats * n_bars * batch, nbf * rsz)

    out_pad = params["b2"].shape[-1]

    args = (x_beats, style,
            params["beats_w_ih"], params["beats_w_hh"], params["beats_b"],
            params["bars_w_ih"], params["bars_w_hh"], params["bars_b"],
            params["w1"], params["b1"], params["w2"], params["b2"])
    vmem = pl.BlockSpec(memory_space=pltpu.MemorySpace.VMEM)

    kernel = functools.partial(_song_info_kernel, batch=batch, n_bars=n_bars,
                               n_beats=n_beats, n_instruments=n_instruments)
    packed = pl.pallas_call(
        kernel,
        out_shape=jax.ShapeDtypeStruct((batch, out_pad), jnp.float32),
        in_specs=[vmem] * len(args),
        out_specs=vmem,
    )(*args)

    instruments = packed[:, :n_instruments]
    mode = packed[:, n_instruments:n_instruments + N_MODES]
    bpm = packed[:, n_instruments + N_MODES]
    return instruments, mode, bpm


# ---------------------------------------------------------------------------
# Pure-JAX reference (sanity check only; uses the same packed parameters)
# ---------------------------------------------------------------------------
def _ref_lstm_last(x3d, w_ih, w_hh, b):
    n = x3d.shape[0]
    h_size = w_hh.shape[-1] // 4

    def step(carry, x_t):
        h, c = carry
        gates = x_t @ w_ih + h @ w_hh + b
        i = jax.nn.sigmoid(gates[:, :h_size])
        f = jax.nn.sigmoid(gates[:, h_size:2 * h_size])
        o = jax.nn.sigmoid(gates[:, 2 * h_size:3 * h_size])
        g = jnp.tanh(gates[:, 3 * h_size:])
        c = f * c + i * g
        h = o * jnp.tanh(c)
        return (h, c), None

    init = (jnp.zeros((n, h_size), jnp.float32),
            jnp.zeros((n, h_size), jnp.float32))
    (h, _), _ = lax.scan(step, init, jnp.swapaxes(x3d, 0, 1))
    return h


def song_info_reference(params, style, rhythm, *, n_instruments):
    batch, n_bars, n_beats, nbf, rsz = rhythm.shape
    x = rhythm.reshape(batch * n_bars, n_beats, nbf * rsz)
    h_beats = _ref_lstm_last(x, params["beats_w_ih"], params["beats_w_hh"],
                             params["beats_b"])
    rf = _ref_lstm_last(h_beats.reshape(batch, n_bars, -1),
                        params["bars_w_ih"], params["bars_w_hh"],
                        params["bars_b"])
    x_heads = jnp.concatenate([style, rf], axis=1)
    h1 = _lrelu(x_heads @ params["w1"] + params["b1"])
    logits = h1 @ params["w2"] + params["b2"]
    inst = logits[:, :n_instruments]
    mode = logits[:, n_instruments:n_instruments + N_MODES]
    bpm = (jax.nn.sigmoid(logits[:, n_instruments + N_MODES]) * BPM_RANGE
           + MIN_BPM)
    return inst, mode, bpm


# ---------------------------------------------------------------------------
# Deterministic parameter construction (packed layouts)
# ---------------------------------------------------------------------------
def _init_linear(key, in_f, out_f):
    k1, k2 = jax.random.split(key)
    bound = 1.0 / math.sqrt(in_f)
    w = jax.random.uniform(k1, (in_f, out_f), jnp.float32, -bound, bound)
    b = jax.random.uniform(k2, (out_f,), jnp.float32, -bound, bound)
    return w, b


def _init_lstm(key, in_f, hid):
    k1, k2, k3, k4 = jax.random.split(key, 4)
    bound = 1.0 / math.sqrt(hid)
    # gate-packed along lanes, gate order (i, f, o, g), stored (in, 4H)
    w_ih = jax.random.uniform(k1, (in_f, 4 * hid), jnp.float32, -bound, bound)
    w_hh = jax.random.uniform(k2, (hid, 4 * hid), jnp.float32, -bound, bound)
    b_ih = jax.random.uniform(k3, (1, 4 * hid), jnp.float32, -bound, bound)
    b_hh = jax.random.uniform(k4, (1, 4 * hid), jnp.float32, -bound, bound)
    return w_ih, w_hh, b_ih + b_hh


def make_params(key, n_rhythm_features, style_size, rhythm_size, n_instruments):
    beats_lstm_size = get_mean_size(N_BEAT_FRACTIONS * rhythm_size,
                                    n_rhythm_features, factor=0.05)
    si = get_mean_size(style_size, n_instruments, factor=0.05)
    ri = get_mean_size(rhythm_size, n_instruments, factor=0.25)
    sm = get_mean_size(style_size, N_MODES, factor=0.01)
    rm = get_mean_size(rhythm_size, N_MODES, factor=0.1)
    sb = get_mean_size(style_size, 1, factor=0.01)
    rb = get_mean_size(rhythm_size, 1, factor=0.1)

    keys = jax.random.split(key, 11)
    p = {}
    p["beats_w_ih"], p["beats_w_hh"], p["beats_b"] = _init_lstm(
        keys[0], N_BEAT_FRACTIONS * rhythm_size, beats_lstm_size)
    p["bars_w_ih"], p["bars_w_hh"], p["bars_b"] = _init_lstm(
        keys[1], beats_lstm_size, n_rhythm_features)

    # per-head first-layer weights
    w_si, b_si = _init_linear(keys[2], style_size, si)
    w_sm, b_sm = _init_linear(keys[3], style_size, sm)
    w_sb, b_sb = _init_linear(keys[4], style_size, sb)
    w_ri, b_ri = _init_linear(keys[5], n_rhythm_features, ri)
    w_rm, b_rm = _init_linear(keys[6], n_rhythm_features, rm)
    w_rb, b_rb = _init_linear(keys[7], n_rhythm_features, rb)

    hs_tot, hr_tot = si + sm + sb, ri + rm + rb
    S, R = style_size, n_rhythm_features

    # First head layer: block-diagonal over [style ‖ rhythm_features].
    w1 = jnp.zeros((S + R, hs_tot + hr_tot), jnp.float32)
    w1 = w1.at[:S, 0:si].set(w_si)
    w1 = w1.at[:S, si:si + sm].set(w_sm)
    w1 = w1.at[:S, si + sm:hs_tot].set(w_sb)
    w1 = w1.at[S:, hs_tot:hs_tot + ri].set(w_ri)
    w1 = w1.at[S:, hs_tot + ri:hs_tot + ri + rm].set(w_rm)
    w1 = w1.at[S:, hs_tot + ri + rm:].set(w_rb)
    b1 = jnp.concatenate([b_si, b_sm, b_sb, b_ri, b_rm, b_rb])[None, :]
    p["w1"], p["b1"] = w1, b1

    # Second head layer: row-stacked [style-path ; rhythm-path] blocks,
    # lane-padded output columns [instruments | mode | bpm | zeros].
    wi, b_i = _init_linear(keys[8], si + ri, n_instruments)
    wm, b_m = _init_linear(keys[9], sm + rm, N_MODES)
    wb, b_b = _init_linear(keys[10], sb + rb, 1)

    n_out = n_instruments + N_MODES + 1
    out_pad = _LANE * pl.cdiv(n_out, _LANE)
    w2 = jnp.zeros((hs_tot + hr_tot, out_pad), jnp.float32)
    b2 = jnp.zeros((1, out_pad), jnp.float32)
    c0, c1, c2 = 0, n_instruments, n_instruments + N_MODES
    # cat_with_broadcast([style_path, rhythm_path], -1): first s* rows of each
    # torch second-layer weight act on the style path, the rest on rhythm.
    w2 = w2.at[0:si, c0:c1].set(wi[:si])
    w2 = w2.at[hs_tot:hs_tot + ri, c0:c1].set(wi[si:])
    w2 = w2.at[si:si + sm, c1:c2].set(wm[:sm])
    w2 = w2.at[hs_tot + ri:hs_tot + ri + rm, c1:c2].set(wm[sm:])
    w2 = w2.at[si + sm:hs_tot, c2:c2 + 1].set(wb[:sb])
    w2 = w2.at[hs_tot + ri + rm:, c2:c2 + 1].set(wb[sb:])
    b2 = b2.at[0, c0:c1].set(b_i)
    b2 = b2.at[0, c1:c2].set(b_m)
    b2 = b2.at[0, c2].set(b_b[0])
    p["w2"], p["b2"] = w2, b2
    return p


# ---------------------------------------------------------------------------
if __name__ == "__main__":
    batch = 2
    n_bars, n_beats = 4, 8
    n_rhythm_features, style_size, rhythm_size, n_instruments = 32, 64, 16, 8

    key = jax.random.PRNGKey(0)
    k_params, k_style, k_rhythm = jax.random.split(key, 3)

    params = make_params(k_params, n_rhythm_features, style_size,
                         rhythm_size, n_instruments)
    style = jax.random.normal(k_style, (batch, style_size), jnp.float32)
    rhythm = jax.random.normal(
        k_rhythm, (batch, n_bars, n_beats, N_BEAT_FRACTIONS, rhythm_size),
        jnp.float32)

    fwd = jax.jit(functools.partial(song_info_forward,
                                    n_instruments=n_instruments))
    instruments, mode, bpm = fwd(params, style, rhythm)
    jax.block_until_ready((instruments, mode, bpm))

    assert instruments.shape == (batch, n_instruments)
    assert mode.shape == (batch, N_MODES)
    assert bpm.shape == (batch,)

    # Sanity check vs. pure-JAX reference (loose tol: MXU f32 matmul passes).
    ref_inst, ref_mode, ref_bpm = song_info_reference(
        params, style, rhythm, n_instruments=n_instruments)
    assert bool(jnp.allclose(instruments, ref_inst, rtol=5e-2, atol=5e-2))
    assert bool(jnp.allclose(mode, ref_mode, rtol=5e-2, atol=5e-2))
    assert bool(jnp.allclose(bpm, ref_bpm, rtol=5e-2, atol=1.0))
    assert bool(jnp.all((bpm >= MIN_BPM) & (bpm <= MAX_BPM)))
    print("KERNEL_OK")
</pallas_src>

<mosaic_0001>
module attributes {stable_mosaic.version = 11 : i64} {
  func.func @_song_info_kernel(%arg0: memref<64x160xf32, #tpu.memory_space<vmem>>, %arg1: memref<2x64xf32, #tpu.memory_space<vmem>>, %arg2: memref<160x20xf32, #tpu.memory_space<vmem>>, %arg3: memref<5x20xf32, #tpu.memory_space<vmem>>, %arg4: memref<1x20xf32, #tpu.memory_space<vmem>>, %arg5: memref<5x128xf32, #tpu.memory_space<vmem>>, %arg6: memref<32x128xf32, #tpu.memory_space<vmem>>, %arg7: memref<1x128xf32, #tpu.memory_space<vmem>>, %arg8: memref<96x9xf32, #tpu.memory_space<vmem>>, %arg9: memref<1x9xf32, #tpu.memory_space<vmem>>, %arg10: memref<9x128xf32, #tpu.memory_space<vmem>>, %arg11: memref<1x128xf32, #tpu.memory_space<vmem>>, %arg12: memref<2x128xf32, #tpu.memory_space<vmem>>) attributes {dimension_semantics = [], scalar_prefetch = 0 : i64, scratch_operands = 0 : i64, tpu.core_type = #tpu.core_type<tc>} {
    %c0 = arith.constant 0 : index
    %c0_0 = arith.constant 0 : index
    %0 = vector.load %arg0[%c0, %c0_0] : memref<64x160xf32, #tpu.memory_space<vmem>>, vector<64x160xf32>
    %c0_1 = arith.constant 0 : index
    %c0_2 = arith.constant 0 : index
    %1 = vector.load %arg2[%c0_1, %c0_2] : memref<160x20xf32, #tpu.memory_space<vmem>>, vector<160x20xf32>
    %c0_3 = arith.constant 0 : index
    %c0_4 = arith.constant 0 : index
    %2 = vector.load %arg3[%c0_3, %c0_4] : memref<5x20xf32, #tpu.memory_space<vmem>>, vector<5x20xf32>
    %c0_5 = arith.constant 0 : index
    %c0_6 = arith.constant 0 : index
    %3 = vector.load %arg4[%c0_5, %c0_6] : memref<1x20xf32, #tpu.memory_space<vmem>>, vector<1x20xf32>
    %cst = arith.constant dense<0.000000e+00> : vector<64x20xf32>
    %4 = tpu.matmul %0, %1, %cst {dimension_numbers = #tpu.dot_dimension_numbers<[1], [0], [0], [1], [0, 0, 1, 1], [], []>} : vector<64x160xf32>, vector<160x20xf32>, vector<64x20xf32> -> vector<64x20xf32>
    %5 = vector.broadcast %3 : vector<1x20xf32> to vector<64x20xf32>
    %6 = arith.addf %4, %5 : vector<64x20xf32>
    %cst_7 = arith.constant 0.000000e+00 : f32
    %7 = vector.broadcast %cst_7 : f32 to vector<8x5xf32>
    %cst_8 = arith.constant 0.000000e+00 : f32
    %8 = vector.broadcast %cst_8 : f32 to vector<8x5xf32>
    %9 = vector.extract_strided_slice %6 {offsets = [0, 0], sizes = [8, 20], strides = [1, 1]} : vector<64x20xf32> to vector<8x20xf32>
    %cst_9 = arith.constant dense<0.000000e+00> : vector<8x20xf32>
    %10 = tpu.matmul %7, %2, %cst_9 {dimension_numbers = #tpu.dot_dimension_numbers<[1], [0], [0], [1], [0, 0, 1, 1], [], []>} : vector<8x5xf32>, vector<5x20xf32>, vector<8x20xf32> -> vector<8x20xf32>
    %11 = arith.addf %9, %10 : vector<8x20xf32>
    %12 = vector.extract_strided_slice %11 {offsets = [0, 0], sizes = [8, 15], strides = [1, 1]} : vector<8x20xf32> to vector<8x15xf32>
    %13 = arith.negf %12 : vector<8x15xf32>
    %14 = math.exp %13 : vector<8x15xf32>
    %cst_10 = arith.constant 1.000000e+00 : f32
    %15 = vector.broadcast %cst_10 : f32 to vector<8x15xf32>
    %16 = arith.addf %15, %14 : vector<8x15xf32>
    %17 = arith.divf %15, %16 : vector<8x15xf32>
    %18 = vector.extract_strided_slice %11 {offsets = [0, 15], sizes = [8, 5], strides = [1, 1]} : vector<8x20xf32> to vector<8x5xf32>
    %19 = math.tanh %18 : vector<8x5xf32>
    %20 = vector.extract_strided_slice %17 {offsets = [0, 0], sizes = [8, 5], strides = [1, 1]} : vector<8x15xf32> to vector<8x5xf32>
    %21 = vector.extract_strided_slice %17 {offsets = [0, 5], sizes = [8, 5], strides = [1, 1]} : vector<8x15xf32> to vector<8x5xf32>
    %22 = vector.extract_strided_slice %17 {offsets = [0, 10], sizes = [8, 5], strides = [1, 1]} : vector<8x15xf32> to vector<8x5xf32>
    %23 = arith.mulf %21, %8 : vector<8x5xf32>
    %24 = arith.mulf %20, %19 : vector<8x5xf32>
    %25 = arith.addf %23, %24 : vector<8x5xf32>
    %26 = math.tanh %25 : vector<8x5xf32>
    %27 = arith.mulf %22, %26 : vector<8x5xf32>
    %28 = vector.extract_strided_slice %6 {offsets = [8, 0], sizes = [8, 20], strides = [1, 1]} : vector<64x20xf32> to vector<8x20xf32>
    %cst_11 = arith.constant dense<0.000000e+00> : vector<8x20xf32>
    %29 = tpu.matmul %27, %2, %cst_11 {dimension_numbers = #tpu.dot_dimension_numbers<[1], [0], [0], [1], [0, 0, 1, 1], [], []>} : vector<8x5xf32>, vector<5x20xf32>, vector<8x20xf32> -> vector<8x20xf32>
    %30 = arith.addf %28, %29 : vector<8x20xf32>
    %31 = vector.extract_strided_slice %30 {offsets = [0, 0], sizes = [8, 15], strides = [1, 1]} : vector<8x20xf32> to vector<8x15xf32>
    %32 = arith.negf %31 : vector<8x15xf32>
    %33 = math.exp %32 : vector<8x15xf32>
    %cst_12 = arith.constant 1.000000e+00 : f32
    %34 = vector.broadcast %cst_12 : f32 to vector<8x15xf32>
    %35 = arith.addf %34, %33 : vector<8x15xf32>
    %36 = arith.divf %34, %35 : vector<8x15xf32>
    %37 = vector.extract_strided_slice %30 {offsets = [0, 15], sizes = [8, 5], strides = [1, 1]} : vector<8x20xf32> to vector<8x5xf32>
    %38 = math.tanh %37 : vector<8x5xf32>
    %39 = vector.extract_strided_slice %36 {offsets = [0, 0], sizes = [8, 5], strides = [1, 1]} : vector<8x15xf32> to vector<8x5xf32>
    %40 = vector.extract_strided_slice %36 {offsets = [0, 5], sizes = [8, 5], strides = [1, 1]} : vector<8x15xf32> to vector<8x5xf32>
    %41 = vector.extract_strided_slice %36 {offsets = [0, 10], sizes = [8, 5], strides = [1, 1]} : vector<8x15xf32> to vector<8x5xf32>
    %42 = arith.mulf %40, %25 : vector<8x5xf32>
    %43 = arith.mulf %39, %38 : vector<8x5xf32>
    %44 = arith.addf %42, %43 : vector<8x5xf32>
    %45 = math.tanh %44 : vector<8x5xf32>
    %46 = arith.mulf %41, %45 : vector<8x5xf32>
    %47 = vector.extract_strided_slice %6 {offsets = [16, 0], sizes = [8, 20], strides = [1, 1]} : vector<64x20xf32> to vector<8x20xf32>
    %cst_13 = arith.constant dense<0.000000e+00> : vector<8x20xf32>
    %48 = tpu.matmul %46, %2, %cst_13 {dimension_numbers = #tpu.dot_dimension_numbers<[1], [0], [0], [1], [0, 0, 1, 1], [], []>} : vector<8x5xf32>, vector<5x20xf32>, vector<8x20xf32> -> vector<8x20xf32>
    %49 = arith.addf %47, %48 : vector<8x20xf32>
    %50 = vector.extract_strided_slice %49 {offsets = [0, 0], sizes = [8, 15], strides = [1, 1]} : vector<8x20xf32> to vector<8x15xf32>
    %51 = arith.negf %50 : vector<8x15xf32>
    %52 = math.exp %51 : vector<8x15xf32>
    %cst_14 = arith.constant 1.000000e+00 : f32
    %53 = vector.broadcast %cst_14 : f32 to vector<8x15xf32>
    %54 = arith.addf %53, %52 : vector<8x15xf32>
    %55 = arith.divf %53, %54 : vector<8x15xf32>
    %56 = vector.extract_strided_slice %49 {offsets = [0, 15], sizes = [8, 5], strides = [1, 1]} : vector<8x20xf32> to vector<8x5xf32>
    %57 = math.tanh %56 : vector<8x5xf32>
    %58 = vector.extract_strided_slice %55 {offsets = [0, 0], sizes = [8, 5], strides = [1, 1]} : vector<8x15xf32> to vector<8x5xf32>
    %59 = vector.extract_strided_slice %55 {offsets = [0, 5], sizes = [8, 5], strides = [1, 1]} : vector<8x15xf32> to vector<8x5xf32>
    %60 = vector.extract_strided_slice %55 {offsets = [0, 10], sizes = [8, 5], strides = [1, 1]} : vector<8x15xf32> to vector<8x5xf32>
    %61 = arith.mulf %59, %44 : vector<8x5xf32>
    %62 = arith.mulf %58, %57 : vector<8x5xf32>
    %63 = arith.addf %61, %62 : vector<8x5xf32>
    %64 = math.tanh %63 : vector<8x5xf32>
    %65 = arith.mulf %60, %64 : vector<8x5xf32>
    %66 = vector.extract_strided_slice %6 {offsets = [24, 0], sizes = [8, 20], strides = [1, 1]} : vector<64x20xf32> to vector<8x20xf32>
    %cst_15 = arith.constant dense<0.000000e+00> : vector<8x20xf32>
    %67 = tpu.matmul %65, %2, %cst_15 {dimension_numbers = #tpu.dot_dimension_numbers<[1], [0], [0], [1], [0, 0, 1, 1], [], []>} : vector<8x5xf32>, vector<5x20xf32>, vector<8x20xf32> -> vector<8x20xf32>
    %68 = arith.addf %66, %67 : vector<8x20xf32>
    %69 = vector.extract_strided_slice %68 {offsets = [0, 0], sizes = [8, 15], strides = [1, 1]} : vector<8x20xf32> to vector<8x15xf32>
    %70 = arith.negf %69 : vector<8x15xf32>
    %71 = math.exp %70 : vector<8x15xf32>
    %cst_16 = arith.constant 1.000000e+00 : f32
    %72 = vector.broadcast %cst_16 : f32 to vector<8x15xf32>
    %73 = arith.addf %72, %71 : vector<8x15xf32>
    %74 = arith.divf %72, %73 : vector<8x15xf32>
    %75 = vector.extract_strided_slice %68 {offsets = [0, 15], sizes = [8, 5], strides = [1, 1]} : vector<8x20xf32> to vector<8x5xf32>
    %76 = math.tanh %75 : vector<8x5xf32>
    %77 = vector.extract_strided_slice %74 {offsets = [0, 0], sizes = [8, 5], strides = [1, 1]} : vector<8x15xf32> to vector<8x5xf32>
    %78 = vector.extract_strided_slice %74 {offsets = [0, 5], sizes = [8, 5], strides = [1, 1]} : vector<8x15xf32> to vector<8x5xf32>
    %79 = vector.extract_strided_slice %74 {offsets = [0, 10], sizes = [8, 5], strides = [1, 1]} : vector<8x15xf32> to vector<8x5xf32>
    %80 = arith.mulf %78, %63 : vector<8x5xf32>
    %81 = arith.mulf %77, %76 : vector<8x5xf32>
    %82 = arith.addf %80, %81 : vector<8x5xf32>
    %83 = math.tanh %82 : vector<8x5xf32>
    %84 = arith.mulf %79, %83 : vector<8x5xf32>
    %85 = vector.extract_strided_slice %6 {offsets = [32, 0], sizes = [8, 20], strides = [1, 1]} : vector<64x20xf32> to vector<8x20xf32>
    %cst_17 = arith.constant dense<0.000000e+00> : vector<8x20xf32>
    %86 = tpu.matmul %84, %2, %cst_17 {dimension_numbers = #tpu.dot_dimension_numbers<[1], [0], [0], [1], [0, 0, 1, 1], [], []>} : vector<8x5xf32>, vector<5x20xf32>, vector<8x20xf32> -> vector<8x20xf32>
    %87 = arith.addf %85, %86 : vector<8x20xf32>
    %88 = vector.extract_strided_slice %87 {offsets = [0, 0], sizes = [8, 15], strides = [1, 1]} : vector<8x20xf32> to vector<8x15xf32>
    %89 = arith.negf %88 : vector<8x15xf32>
    %90 = math.exp %89 : vector<8x15xf32>
    %cst_18 = arith.constant 1.000000e+00 : f32
    %91 = vector.broadcast %cst_18 : f32 to vector<8x15xf32>
    %92 = arith.addf %91, %90 : vector<8x15xf32>
    %93 = arith.divf %91, %92 : vector<8x15xf32>
    %94 = vector.extract_strided_slice %87 {offsets = [0, 15], sizes = [8, 5], strides = [1, 1]} : vector<8x20xf32> to vector<8x5xf32>
    %95 = math.tanh %94 : vector<8x5xf32>
    %96 = vector.extract_strided_slice %93 {offsets = [0, 0], sizes = [8, 5], strides = [1, 1]} : vector<8x15xf32> to vector<8x5xf32>
    %97 = vector.extract_strided_slice %93 {offsets = [0, 5], sizes = [8, 5], strides = [1, 1]} : vector<8x15xf32> to vector<8x5xf32>
    %98 = vector.extract_strided_slice %93 {offsets = [0, 10], sizes = [8, 5], strides = [1, 1]} : vector<8x15xf32> to vector<8x5xf32>
    %99 = arith.mulf %97, %82 : vector<8x5xf32>
    %100 = arith.mulf %96, %95 : vector<8x5xf32>
    %101 = arith.addf %99, %100 : vector<8x5xf32>
    %102 = math.tanh %101 : vector<8x5xf32>
    %103 = arith.mulf %98, %102 : vector<8x5xf32>
    %104 = vector.extract_strided_slice %6 {offsets = [40, 0], sizes = [8, 20], strides = [1, 1]} : vector<64x20xf32> to vector<8x20xf32>
    %cst_19 = arith.constant dense<0.000000e+00> : vector<8x20xf32>
    %105 = tpu.matmul %103, %2, %cst_19 {dimension_numbers = #tpu.dot_dimension_numbers<[1], [0], [0], [1], [0, 0, 1, 1], [], []>} : vector<8x5xf32>, vector<5x20xf32>, vector<8x20xf32> -> vector<8x20xf32>
    %106 = arith.addf %104, %105 : vector<8x20xf32>
    %107 = vector.extract_strided_slice %106 {offsets = [0, 0], sizes = [8, 15], strides = [1, 1]} : vector<8x20xf32> to vector<8x15xf32>
    %108 = arith.negf %107 : vector<8x15xf32>
    %109 = math.exp %108 : vector<8x15xf32>
    %cst_20 = arith.constant 1.000000e+00 : f32
    %110 = vector.broadcast %cst_20 : f32 to vector<8x15xf32>
    %111 = arith.addf %110, %109 : vector<8x15xf32>
    %112 = arith.divf %110, %111 : vector<8x15xf32>
    %113 = vector.extract_strided_slice %106 {offsets = [0, 15], sizes = [8, 5], strides = [1, 1]} : vector<8x20xf32> to vector<8x5xf32>
    %114 = math.tanh %113 : vector<8x5xf32>
    %115 = vector.extract_strided_slice %112 {offsets = [0, 0], sizes = [8, 5], strides = [1, 1]} : vector<8x15xf32> to vector<8x5xf32>
    %116 = vector.extract_strided_slice %112 {offsets = [0, 5], sizes = [8, 5], strides = [1, 1]} : vector<8x15xf32> to vector<8x5xf32>
    %117 = vector.extract_strided_slice %112 {offsets = [0, 10], sizes = [8, 5], strides = [1, 1]} : vector<8x15xf32> to vector<8x5xf32>
    %118 = arith.mulf %116, %101 : vector<8x5xf32>
    %119 = arith.mulf %115, %114 : vector<8x5xf32>
    %120 = arith.addf %118, %119 : vector<8x5xf32>
    %121 = math.tanh %120 : vector<8x5xf32>
    %122 = arith.mulf %117, %121 : vector<8x5xf32>
    %123 = vector.extract_strided_slice %6 {offsets = [48, 0], sizes = [8, 20], strides = [1, 1]} : vector<64x20xf32> to vector<8x20xf32>
    %cst_21 = arith.constant dense<0.000000e+00> : vector<8x20xf32>
    %124 = tpu.matmul %122, %2, %cst_21 {dimension_numbers = #tpu.dot_dimension_numbers<[1], [0], [0], [1], [0, 0, 1, 1], [], []>} : vector<8x5xf32>, vector<5x20xf32>, vector<8x20xf32> -> vector<8x20xf32>
    %125 = arith.addf %123, %124 : vector<8x20xf32>
    %126 = vector.extract_strided_slice %125 {offsets = [0, 0], sizes = [8, 15], strides = [1, 1]} : vector<8x20xf32> to vector<8x15xf32>
    %127 = arith.negf %126 : vector<8x15xf32>
    %128 = math.exp %127 : vector<8x15xf32>
    %cst_22 = arith.constant 1.000000e+00 : f32
    %129 = vector.broadcast %cst_22 : f32 to vector<8x15xf32>
    %130 = arith.addf %129, %128 : vector<8x15xf32>
    %131 = arith.divf %129, %130 : vector<8x15xf32>
    %132 = vector.extract_strided_slice %125 {offsets = [0, 15], sizes = [8, 5], strides = [1, 1]} : vector<8x20xf32> to vector<8x5xf32>
    %133 = math.tanh %132 : vector<8x5xf32>
    %134 = vector.extract_strided_slice %131 {offsets = [0, 0], sizes = [8, 5], strides = [1, 1]} : vector<8x15xf32> to vector<8x5xf32>
    %135 = vector.extract_strided_slice %131 {offsets = [0, 5], sizes = [8, 5], strides = [1, 1]} : vector<8x15xf32> to vector<8x5xf32>
    %136 = vector.extract_strided_slice %131 {offsets = [0, 10], sizes = [8, 5], strides = [1, 1]} : vector<8x15xf32> to vector<8x5xf32>
    %137 = arith.mulf %135, %120 : vector<8x5xf32>
    %138 = arith.mulf %134, %133 : vector<8x5xf32>
    %139 = arith.addf %137, %138 : vector<8x5xf32>
    %140 = math.tanh %139 : vector<8x5xf32>
    %141 = arith.mulf %136, %140 : vector<8x5xf32>
    %142 = vector.extract_strided_slice %6 {offsets = [56, 0], sizes = [8, 20], strides = [1, 1]} : vector<64x20xf32> to vector<8x20xf32>
    %cst_23 = arith.constant dense<0.000000e+00> : vector<8x20xf32>
    %143 = tpu.matmul %141, %2, %cst_23 {dimension_numbers = #tpu.dot_dimension_numbers<[1], [0], [0], [1], [0, 0, 1, 1], [], []>} : vector<8x5xf32>, vector<5x20xf32>, vector<8x20xf32> -> vector<8x20xf32>
    %144 = arith.addf %142, %143 : vector<8x20xf32>
    %145 = vector.extract_strided_slice %144 {offsets = [0, 0], sizes = [8, 15], strides = [1, 1]} : vector<8x20xf32> to vector<8x15xf32>
    %146 = arith.negf %145 : vector<8x15xf32>
    %147 = math.exp %146 : vector<8x15xf32>
    %cst_24 = arith.constant 1.000000e+00 : f32
    %148 = vector.broadcast %cst_24 : f32 to vector<8x15xf32>
    %149 = arith.addf %148, %147 : vector<8x15xf32>
    %150 = arith.divf %148, %149 : vector<8x15xf32>
    %151 = vector.extract_strided_slice %144 {offsets = [0, 15], sizes = [8, 5], strides = [1, 1]} : vector<8x20xf32> to vector<8x5xf32>
    %152 = math.tanh %151 : vector<8x5xf32>
    %153 = vector.extract_strided_slice %150 {offsets = [0, 0], sizes = [8, 5], strides = [1, 1]} : vector<8x15xf32> to vector<8x5xf32>
    %154 = vector.extract_strided_slice %150 {offsets = [0, 5], sizes = [8, 5], strides = [1, 1]} : vector<8x15xf32> to vector<8x5xf32>
    %155 = vector.extract_strided_slice %150 {offsets = [0, 10], sizes = [8, 5], strides = [1, 1]} : vector<8x15xf32> to vector<8x5xf32>
    %156 = arith.mulf %154, %139 : vector<8x5xf32>
    %157 = arith.mulf %153, %152 : vector<8x5xf32>
    %158 = arith.addf %156, %157 : vector<8x5xf32>
    %159 = math.tanh %158 : vector<8x5xf32>
    %160 = arith.mulf %155, %159 : vector<8x5xf32>
    %c0_25 = arith.constant 0 : index
    %c0_26 = arith.constant 0 : index
    %161 = vector.load %arg5[%c0_25, %c0_26] : memref<5x128xf32, #tpu.memory_space<vmem>>, vector<5x128xf32>
    %c0_27 = arith.constant 0 : index
    %c0_28 = arith.constant 0 : index
    %162 = vector.load %arg6[%c0_27, %c0_28] : memref<32x128xf32, #tpu.memory_space<vmem>>, vector<32x128xf32>
    %c0_29 = arith.constant 0 : index
    %c0_30 = arith.constant 0 : index
    %163 = vector.load %arg7[%c0_29, %c0_30] : memref<1x128xf32, #tpu.memory_space<vmem>>, vector<1x128xf32>
    %cst_31 = arith.constant dense<0.000000e+00> : vector<8x128xf32>
    %164 = tpu.matmul %160, %161, %cst_31 {dimension_numbers = #tpu.dot_dimension_numbers<[1], [0], [0], [1], [0, 0, 1, 1], [], []>} : vector<8x5xf32>, vector<5x128xf32>, vector<8x128xf32> -> vector<8x128xf32>
    %165 = vector.broadcast %163 : vector<1x128xf32> to vector<8x128xf32>
    %166 = arith.addf %164, %165 : vector<8x128xf32>
    %cst_32 = arith.constant 0.000000e+00 : f32
    %167 = vector.broadcast %cst_32 : f32 to vector<2x32xf32>
    %cst_33 = arith.constant 0.000000e+00 : f32
    %168 = vector.broadcast %cst_33 : f32 to vector<2x32xf32>
    %169 = vector.extract_strided_slice %166 {offsets = [0, 0], sizes = [2, 128], strides = [1, 1]} : vector<8x128xf32> to vector<2x128xf32>
    %cst_34 = arith.constant dense<0.000000e+00> : vector<2x128xf32>
    %170 = tpu.matmul %167, %162, %cst_34 {dimension_numbers = #tpu.dot_dimension_numbers<[1], [0], [0], [1], [0, 0, 1, 1], [], []>} : vector<2x32xf32>, vector<32x128xf32>, vector<2x128xf32> -> vector<2x128xf32>
    %171 = arith.addf %169, %170 : vector<2x128xf32>
    %172 = vector.extract_strided_slice %171 {offsets = [0, 0], sizes = [2, 96], strides = [1, 1]} : vector<2x128xf32> to vector<2x96xf32>
    %173 = arith.negf %172 : vector<2x96xf32>
    %174 = math.exp %173 : vector<2x96xf32>
    %cst_35 = arith.constant 1.000000e+00 : f32
    %175 = vector.broadcast %cst_35 : f32 to vector<2x96xf32>
    %176 = arith.addf %175, %174 : vector<2x96xf32>
    %177 = arith.divf %175, %176 : vector<2x96xf32>
    %178 = vector.extract_strided_slice %171 {offsets = [0, 96], sizes = [2, 32], strides = [1, 1]} : vector<2x128xf32> to vector<2x32xf32>
    %179 = math.tanh %178 : vector<2x32xf32>
    %180 = vector.extract_strided_slice %177 {offsets = [0, 0], sizes = [2, 32], strides = [1, 1]} : vector<2x96xf32> to vector<2x32xf32>
    %181 = vector.extract_strided_slice %177 {offsets = [0, 32], sizes = [2, 32], strides = [1, 1]} : vector<2x96xf32> to vector<2x32xf32>
    %182 = vector.extract_strided_slice %177 {offsets = [0, 64], sizes = [2, 32], strides = [1, 1]} : vector<2x96xf32> to vector<2x32xf32>
    %183 = arith.mulf %181, %168 : vector<2x32xf32>
    %184 = arith.mulf %180, %179 : vector<2x32xf32>
    %185 = arith.addf %183, %184 : vector<2x32xf32>
    %186 = math.tanh %185 : vector<2x32xf32>
    %187 = arith.mulf %182, %186 : vector<2x32xf32>
    %188 = vector.extract_strided_slice %166 {offsets = [2, 0], sizes = [2, 128], strides = [1, 1]} : vector<8x128xf32> to vector<2x128xf32>
    %cst_36 = arith.constant dense<0.000000e+00> : vector<2x128xf32>
    %189 = tpu.matmul %187, %162, %cst_36 {dimension_numbers = #tpu.dot_dimension_numbers<[1], [0], [0], [1], [0, 0, 1, 1], [], []>} : vector<2x32xf32>, vector<32x128xf32>, vector<2x128xf32> -> vector<2x128xf32>
    %190 = arith.addf %188, %189 : vector<2x128xf32>
    %191 = vector.extract_strided_slice %190 {offsets = [0, 0], sizes = [2, 96], strides = [1, 1]} : vector<2x128xf32> to vector<2x96xf32>
    %192 = arith.negf %191 : vector<2x96xf32>
    %193 = math.exp %192 : vector<2x96xf32>
    %cst_37 = arith.constant 1.000000e+00 : f32
    %194 = vector.broadcast %cst_37 : f32 to vector<2x96xf32>
    %195 = arith.addf %194, %193 : vector<2x96xf32>
    %196 = arith.divf %194, %195 : vector<2x96xf32>
    %197 = vector.extract_strided_slice %190 {offsets = [0, 96], sizes = [2, 32], strides = [1, 1]} : vector<2x128xf32> to vector<2x32xf32>
    %198 = math.tanh %197 : vector<2x32xf32>
    %199 = vector.extract_strided_slice %196 {offsets = [0, 0], sizes = [2, 32], strides = [1, 1]} : vector<2x96xf32> to vector<2x32xf32>
    %200 = vector.extract_strided_slice %196 {offsets = [0, 32], sizes = [2, 32], strides = [1, 1]} : vector<2x96xf32> to vector<2x32xf32>
    %201 = vector.extract_strided_slice %196 {offsets = [0, 64], sizes = [2, 32], strides = [1, 1]} : vector<2x96xf32> to vector<2x32xf32>
    %202 = arith.mulf %200, %185 : vector<2x32xf32>
    %203 = arith.mulf %199, %198 : vector<2x32xf32>
    %204 = arith.addf %202, %203 : vector<2x32xf32>
    %205 = math.tanh %204 : vector<2x32xf32>
    %206 = arith.mulf %201, %205 : vector<2x32xf32>
    %207 = vector.extract_strided_slice %166 {offsets = [4, 0], sizes = [2, 128], strides = [1, 1]} : vector<8x128xf32> to vector<2x128xf32>
    %cst_38 = arith.constant dense<0.000000e+00> : vector<2x128xf32>
    %208 = tpu.matmul %206, %162, %cst_38 {dimension_numbers = #tpu.dot_dimension_numbers<[1], [0], [0], [1], [0, 0, 1, 1], [], []>} : vector<2x32xf32>, vector<32x128xf32>, vector<2x128xf32> -> vector<2x128xf32>
    %209 = arith.addf %207, %208 : vector<2x128xf32>
    %210 = vector.extract_strided_slice %209 {offsets = [0, 0], sizes = [2, 96], strides = [1, 1]} : vector<2x128xf32> to vector<2x96xf32>
    %211 = arith.negf %210 : vector<2x96xf32>
    %212 = math.exp %211 : vector<2x96xf32>
    %cst_39 = arith.constant 1.000000e+00 : f32
    %213 = vector.broadcast %cst_39 : f32 to vector<2x96xf32>
    %214 = arith.addf %213, %212 : vector<2x96xf32>
    %215 = arith.divf %213, %214 : vector<2x96xf32>
    %216 = vector.extract_strided_slice %209 {offsets = [0, 96], sizes = [2, 32], strides = [1, 1]} : vector<2x128xf32> to vector<2x32xf32>
    %217 = math.tanh %216 : vector<2x32xf32>
    %218 = vector.extract_strided_slice %215 {offsets = [0, 0], sizes = [2, 32], strides = [1, 1]} : vector<2x96xf32> to vector<2x32xf32>
    %219 = vector.extract_strided_slice %215 {offsets = [0, 32], sizes = [2, 32], strides = [1, 1]} : vector<2x96xf32> to vector<2x32xf32>
    %220 = vector.extract_strided_slice %215 {offsets = [0, 64], sizes = [2, 32], strides = [1, 1]} : vector<2x96xf32> to vector<2x32xf32>
    %221 = arith.mulf %219, %204 : vector<2x32xf32>
    %222 = arith.mulf %218, %217 : vector<2x32xf32>
    %223 = arith.addf %221, %222 : vector<2x32xf32>
    %224 = math.tanh %223 : vector<2x32xf32>
    %225 = arith.mulf %220, %224 : vector<2x32xf32>
    %226 = vector.extract_strided_slice %166 {offsets = [6, 0], sizes = [2, 128], strides = [1, 1]} : vector<8x128xf32> to vector<2x128xf32>
    %cst_40 = arith.constant dense<0.000000e+00> : vector<2x128xf32>
    %227 = tpu.matmul %225, %162, %cst_40 {dimension_numbers = #tpu.dot_dimension_numbers<[1], [0], [0], [1], [0, 0, 1, 1], [], []>} : vector<2x32xf32>, vector<32x128xf32>, vector<2x128xf32> -> vector<2x128xf32>
    %228 = arith.addf %226, %227 : vector<2x128xf32>
    %229 = vector.extract_strided_slice %228 {offsets = [0, 0], sizes = [2, 96], strides = [1, 1]} : vector<2x128xf32> to vector<2x96xf32>
    %230 = arith.negf %229 : vector<2x96xf32>
    %231 = math.exp %230 : vector<2x96xf32>
    %cst_41 = arith.constant 1.000000e+00 : f32
    %232 = vector.broadcast %cst_41 : f32 to vector<2x96xf32>
    %233 = arith.addf %232, %231 : vector<2x96xf32>
    %234 = arith.divf %232, %233 : vector<2x96xf32>
    %235 = vector.extract_strided_slice %228 {offsets = [0, 96], sizes = [2, 32], strides = [1, 1]} : vector<2x128xf32> to vector<2x32xf32>
    %236 = math.tanh %235 : vector<2x32xf32>
    %237 = vector.extract_strided_slice %234 {offsets = [0, 0], sizes = [2, 32], strides = [1, 1]} : vector<2x96xf32> to vector<2x32xf32>
    %238 = vector.extract_strided_slice %234 {offsets = [0, 32], sizes = [2, 32], strides = [1, 1]} : vector<2x96xf32> to vector<2x32xf32>
    %239 = vector.extract_strided_slice %234 {offsets = [0, 64], sizes = [2, 32], strides = [1, 1]} : vector<2x96xf32> to vector<2x32xf32>
    %240 = arith.mulf %238, %223 : vector<2x32xf32>
    %241 = arith.mulf %237, %236 : vector<2x32xf32>
    %242 = arith.addf %240, %241 : vector<2x32xf32>
    %243 = math.tanh %242 : vector<2x32xf32>
    %244 = arith.mulf %239, %243 : vector<2x32xf32>
    %c0_42 = arith.constant 0 : index
    %c0_43 = arith.constant 0 : index
    %245 = vector.load %arg1[%c0_42, %c0_43] : memref<2x64xf32, #tpu.memory_space<vmem>>, vector<2x64xf32>
    %246 = tpu.concatenate %245, %244 in 1 : vector<2x64xf32>, vector<2x32xf32> -> vector<2x96xf32>
    %c0_44 = arith.constant 0 : index
    %c0_45 = arith.constant 0 : index
    %247 = vector.load %arg8[%c0_44, %c0_45] : memref<96x9xf32, #tpu.memory_space<vmem>>, vector<96x9xf32>
    %cst_46 = arith.constant dense<0.000000e+00> : vector<2x9xf32>
    %248 = tpu.matmul %246, %247, %cst_46 {dimension_numbers = #tpu.dot_dimension_numbers<[1], [0], [0], [1], [0, 0, 1, 1], [], []>} : vector<2x96xf32>, vector<96x9xf32>, vector<2x9xf32> -> vector<2x9xf32>
    %c0_47 = arith.constant 0 : index
    %c0_48 = arith.constant 0 : index
    %249 = vector.load %arg9[%c0_47, %c0_48] : memref<1x9xf32, #tpu.memory_space<vmem>>, vector<1x9xf32>
    %250 = vector.broadcast %249 : vector<1x9xf32> to vector<2x9xf32>
    %251 = arith.addf %248, %250 : vector<2x9xf32>
    %cst_49 = arith.constant 0.000000e+00 : f32
    %252 = vector.broadcast %cst_49 : f32 to vector<2x9xf32>
    %253 = arith.cmpf oge, %251, %252 : vector<2x9xf32>
    %cst_50 = arith.constant 0.00999999977 : f32
    %254 = vector.broadcast %cst_50 : f32 to vector<2x9xf32>
    %255 = arith.mulf %254, %251 : vector<2x9xf32>
    %256 = arith.select %253, %251, %255 : vector<2x9xi1>, vector<2x9xf32>
    %c0_51 = arith.constant 0 : index
    %c0_52 = arith.constant 0 : index
    %257 = vector.load %arg10[%c0_51, %c0_52] : memref<9x128xf32, #tpu.memory_space<vmem>>, vector<9x128xf32>
    %cst_53 = arith.constant dense<0.000000e+00> : vector<2x128xf32>
    %258 = tpu.matmul %256, %257, %cst_53 {dimension_numbers = #tpu.dot_dimension_numbers<[1], [0], [0], [1], [0, 0, 1, 1], [], []>} : vector<2x9xf32>, vector<9x128xf32>, vector<2x128xf32> -> vector<2x128xf32>
    %c0_54 = arith.constant 0 : index
    %c0_55 = arith.constant 0 : index
    %259 = vector.load %arg11[%c0_54, %c0_55] : memref<1x128xf32, #tpu.memory_space<vmem>>, vector<1x128xf32>
    %260 = vector.broadcast %259 : vector<1x128xf32> to vector<2x128xf32>
    %261 = arith.addf %258, %260 : vector<2x128xf32>
    %262 = tpu.iota {dimensions = array<i32: 1>} : vector<2x128xi32>
    %c10_i32 = arith.constant 10 : i32
    %263 = vector.broadcast %c10_i32 : i32 to vector<2x128xi32>
    %264 = arith.cmpi eq, %262, %263 : vector<2x128xi32>
    %265 = arith.negf %261 : vector<2x128xf32>
    %266 = math.exp %265 : vector<2x128xf32>
    %cst_56 = arith.constant 1.000000e+00 : f32
    %267 = vector.broadcast %cst_56 : f32 to vector<2x128xf32>
    %268 = arith.addf %267, %266 : vector<2x128xf32>
    %269 = arith.divf %267, %268 : vector<2x128xf32>
    %cst_57 = arith.constant 1.500000e+02 : f32
    %270 = vector.broadcast %cst_57 : f32 to vector<2x128xf32>
    %271 = arith.mulf %269, %270 : vector<2x128xf32>
    %cst_58 = arith.constant 5.000000e+01 : f32
    %272 = vector.broadcast %cst_58 : f32 to vector<2x128xf32>
    %273 = arith.addf %271, %272 : vector<2x128xf32>
    %274 = arith.select %264, %273, %261 : vector<2x128xi1>, vector<2x128xf32>
    %c0_59 = arith.constant 0 : index
    %c0_60 = arith.constant 0 : index
    %275 = vector.load %arg12[%c0_59, %c0_60] : memref<2x128xf32, #tpu.memory_space<vmem>>, vector<2x128xf32>
    tpu.vector_store %arg12[%c0_59, %c0_60], %274 {strides = array<i32>} : memref<2x128xf32, #tpu.memory_space<vmem>>, vector<2x128xf32>,
    return
  }
}

</mosaic_0001>

<llo_original>
// kernel: song_info_forward.1
$region0: #{song_info_forward.1}
  #allocation0 [shape = 'u32[]', space=smem, size = 0x4, offset = 0x4, fixed_abs, tag = 'smem constant byte address 0x4 - core index']
  #allocation1 [shape = 'u32[144,128]{1,0:T(1,128)}', space=vmem, size = 0x12000, scoped, tag = 'internal scratch']
  %s0 = inlined_call_operand.vmem [shape: f32[64,160], index: 0, kind: input, shape index: {}]
  %s1 = inlined_call_operand.vmem [shape: f32[2,64], index: 1, kind: input, shape index: {}]
  %s2 = inlined_call_operand.vmem [shape: f32[160,20], index: 2, kind: input, shape index: {}]
  %s3 = inlined_call_operand.vmem [shape: f32[5,20], index: 3, kind: input, shape index: {}]
  %s4 = inlined_call_operand.vmem [shape: f32[1,20], index: 4, kind: input, shape index: {}]
  %s5 = inlined_call_operand.vmem [shape: f32[5,128], index: 5, kind: input, shape index: {}]
  %s6 = inlined_call_operand.vmem [shape: f32[32,128], index: 6, kind: input, shape index: {}]
  %s7 = inlined_call_operand.vmem [shape: f32[1,128], index: 7, kind: input, shape index: {}]
  %s8 = inlined_call_operand.vmem [shape: f32[96,9], index: 8, kind: input, shape index: {}]
  %s9 = inlined_call_operand.vmem [shape: f32[1,9], index: 9, kind: input, shape index: {}]
  %s10 = inlined_call_operand.vmem [shape: f32[9,128], index: 10, kind: input, shape index: {}]
  %s11 = inlined_call_operand.vmem [shape: f32[1,128], index: 11, kind: input, shape index: {}]
  %s12 = inlined_call_operand.vmem [shape: f32[2,128], index: 12, kind: output, shape index: {}]
  %s13 = sld [smem:[#allocation0]]
  $region58: #{song_info_forward.1} parent=0
    _
  %s15 = ssub.s32 1, %s13
  %s16 = scalar_select 0, %s15, %s13
  // Predicated region
  $region2: #{song_info_forward.1} parent=0 // pred_check
    _
  $region3: #{song_info_forward.1} parent=0 // pred_check_branch
    %18 = sbr.rel (0) target = $region5
  $region4: #{song_info_forward.1} parent=0 // pred_region
    _
  $region5: #{song_info_forward.1} parent=0 // pred_fallthru
    _
  // Predicated region
  $region6: #{song_info_forward.1} parent=0 // pred_check
    _
  $region7: #{song_info_forward.1} parent=0 // pred_check_branch
    %20 = sbr.rel (0) target = $region9
  $region8: #{song_info_forward.1} parent=0 // pred_region
    _
  $region9: #{song_info_forward.1} parent=0 // pred_fallthru
    _
  // Predicated region
  $region10: #{song_info_forward.1} parent=0 // pred_check
    _
  $region11: #{song_info_forward.1} parent=0 // pred_check_branch
    %22 = sbr.rel (0) target = $region13
  $region12: #{song_info_forward.1} parent=0 // pred_region
    _
  $region13: #{song_info_forward.1} parent=0 // pred_fallthru
    _
  // Predicated region
  $region14: #{song_info_forward.1} parent=0 // pred_check
    _
  $region15: #{song_info_forward.1} parent=0 // pred_check_branch
    %24 = sbr.rel (0) target = $region17
  $region16: #{song_info_forward.1} parent=0 // pred_region
    _
  $region17: #{song_info_forward.1} parent=0 // pred_fallthru
    _
  // Predicated region
  $region18: #{song_info_forward.1} parent=0 // pred_check
    _
  $region19: #{song_info_forward.1} parent=0 // pred_check_branch
    %26 = sbr.rel (0) target = $region21
  $region20: #{song_info_forward.1} parent=0 // pred_region
    _
  $region21: #{song_info_forward.1} parent=0 // pred_fallthru
    _
  // Predicated region
  $region22: #{song_info_forward.1} parent=0 // pred_check
    _
  $region23: #{song_info_forward.1} parent=0 // pred_check_branch
    %28 = sbr.rel (0) target = $region25
  $region24: #{song_info_forward.1} parent=0 // pred_region
    _
  $region25: #{song_info_forward.1} parent=0 // pred_fallthru
    _
  // Predicated region
  $region26: #{song_info_forward.1} parent=0 // pred_check
    _
  $region27: #{song_info_forward.1} parent=0 // pred_check_branch
    %30 = sbr.rel (0) target = $region29
  $region28: #{song_info_forward.1} parent=0 // pred_region
    _
  $region29: #{song_info_forward.1} parent=0 // pred_fallthru
    _
  // Predicated region
  $region30: #{song_info_forward.1} parent=0 // pred_check
    _
  $region31: #{song_info_forward.1} parent=0 // pred_check_branch
    %32 = sbr.rel (0) target = $region33
  $region32: #{song_info_forward.1} parent=0 // pred_region
    _
  $region33: #{song_info_forward.1} parent=0 // pred_fallthru
    _
  // Predicated region
  $region34: #{song_info_forward.1} parent=0 // pred_check
    _
  $region35: #{song_info_forward.1} parent=0 // pred_check_branch
    %34 = sbr.rel (0) target = $region37
  $region36: #{song_info_forward.1} parent=0 // pred_region
    _
  $region37: #{song_info_forward.1} parent=0 // pred_fallthru
    _
  // Predicated region
  $region38: #{song_info_forward.1} parent=0 // pred_check
    _
  $region39: #{song_info_forward.1} parent=0 // pred_check_branch
    %36 = sbr.rel (0) target = $region41
  $region40: #{song_info_forward.1} parent=0 // pred_region
    _
  $region41: #{song_info_forward.1} parent=0 // pred_fallthru
    _
  // Predicated region
  $region42: #{song_info_forward.1} parent=0 // pred_check
    _
  $region43: #{song_info_forward.1} parent=0 // pred_check_branch
    %38 = sbr.rel (0) target = $region45
  $region44: #{song_info_forward.1} parent=0 // pred_region
    _
  $region45: #{song_info_forward.1} parent=0 // pred_fallthru
    _
  // Predicated region
  $region46: #{song_info_forward.1} parent=0 // pred_check
    _
  $region47: #{song_info_forward.1} parent=0 // pred_check_branch
    %40 = sbr.rel (0) target = $region49
  $region48: #{song_info_forward.1} parent=0 // pred_region
    _
  $region49: #{song_info_forward.1} parent=0 // pred_fallthru
    _
  %v41 = vld [vmem:[%s0] sm:$0xff]
  %v42 = vld [vmem:[%s0 + $0x8] sm:$0xff]
  %v43 = vld [vmem:[%s0 + $0x10] sm:$0xff]
  %v44 = vld [vmem:[%s0 + $0x18] sm:$0xff]
  %v45 = vld [vmem:[%s0 + $0x20] sm:$0xff]
  %v46 = vld [vmem:[%s0 + $0x28] sm:$0xff]
  %v47 = vld [vmem:[%s0 + $0x30] sm:$0xff]
  %v48 = vld [vmem:[%s0 + $0x38] sm:$0xff]
  %v49 = vld [vmem:[%s0 + $0x40] sm:$0xff]
  %v50 = vld [vmem:[%s0 + $0x48] sm:$0xff]
  %v51 = vld [vmem:[%s0 + $0x50] sm:$0xff]
  %v52 = vld [vmem:[%s0 + $0x58] sm:$0xff]
  %v53 = vld [vmem:[%s0 + $0x60] sm:$0xff]
  %v54 = vld [vmem:[%s0 + $0x68] sm:$0xff]
  %v55 = vld [vmem:[%s0 + $0x70] sm:$0xff]
  %v56 = vld [vmem:[%s0 + $0x78] sm:$0xff]
  %v57 = vld [vmem:[%s2] sm:$0xff]
  %v58 = vld [vmem:[%s2 + $0x8] sm:$0xff]
  %v59 = vld [vmem:[%s2 + $0x10] sm:$0xff]
  %v60 = vld [vmem:[%s2 + $0x18] sm:$0xff]
  %v61 = vld [vmem:[%s2 + $0x20] sm:$0xff]
  %v62 = vld [vmem:[%s2 + $0x28] sm:$0xff]
  %v63 = vld [vmem:[%s2 + $0x30] sm:$0xff]
  %v64 = vld [vmem:[%s2 + $0x38] sm:$0xff]
  %v65 = vld [vmem:[%s2 + $0x40] sm:$0xff]
  %v66 = vld [vmem:[%s2 + $0x48] sm:$0xff]
  %v67 = vld [vmem:[%s2 + $0x50] sm:$0xff]
  %v68 = vld [vmem:[%s2 + $0x58] sm:$0xff]
  %v69 = vld [vmem:[%s2 + $0x60] sm:$0xff]
  %v70 = vld [vmem:[%s2 + $0x68] sm:$0xff]
  %v71 = vld [vmem:[%s2 + $0x70] sm:$0xff]
  %v72 = vld [vmem:[%s2 + $0x78] sm:$0xff]
  %v73 = vld [vmem:[%s2 + $0x80] sm:$0xff]
  %v74 = vld [vmem:[%s2 + $0x88] sm:$0xff]
  %v75 = vld [vmem:[%s2 + $0x90] sm:$0xff]
  %v76 = vld [vmem:[%s2 + $0x98] sm:$0xff]
  %v77 = vld [vmem:[%s3] sm:$0x1f]
  %v78 = vld [vmem:[%s4] sm:$0x1]
  %v80 = vlaneseq
  %v81 = vshrl.u32 %v80, 7
  %v82 = vsub.s32 0, %v81
  %v83 = vrot.slane %v78, %v82
  %vm85 = vcmask 261120
  %v87 = vsel %vm85, %v42, 0
  %v90 = vsel %vm85, %v44, 0
  %v93 = vsel %vm85, %v46, 0
  %v96 = vsel %vm85, %v48, 0
  %v99 = vsel %vm85, %v50, 0
  %v102 = vsel %vm85, %v52, 0
  %v105 = vsel %vm85, %v54, 0
  %v108 = vsel %vm85, %v56, 0
  %110 = vmatprep.subr.mxu0 0.0
  %111 = vmatpush1.msra.mxu0 %v72
  %112 = vmatprep.subr.mxu0 0.0
  %113 = vmatpush1.msra.mxu0 %v71
  %114 = vmatprep.subr.mxu0 0.0
  %115 = vmatpush1.msra.mxu0 %v70
  %116 = vmatprep.subr.mxu0 0.0
  %117 = vmatpush1.msra.mxu0 %v69
  %118 = vmatprep.subr.mxu0 0.0
  %119 = vmatpush1.msra.mxu0 %v68
  %120 = vmatprep.subr.mxu0 0.0
  %121 = vmatpush1.msra.mxu0 %v67
  %122 = vmatprep.subr.mxu0 0.0
  %123 = vmatpush1.msra.mxu0 %v66
  %124 = vmatprep.subr.mxu0 0.0
  %125 = vmatpush1.msra.mxu0 %v65
  %126 = vmatprep.subr.mxu0 0.0
  %127 = vmatpush1.msra.mxu0 %v64
  %128 = vmatprep.subr.mxu0 0.0
  %129 = vmatpush1.msra.mxu0 %v63
  %130 = vmatprep.subr.mxu0 0.0
  %131 = vmatpush1.msra.mxu0 %v62
  %132 = vmatprep.subr.mxu0 0.0
  %133 = vmatpush1.msra.mxu0 %v61
  %134 = vmatprep.subr.mxu0 0.0
  %135 = vmatpush1.msra.mxu0 %v60
  %136 = vmatprep.subr.mxu0 0.0
  %137 = vmatpush1.msra.mxu0 %v59
  %138 = vmatprep.subr.mxu0 0.0
  %139 = vmatpush1.msra.mxu0 %v58
  %140 = vmatprep.subr.mxu0 0.0
  %141 = vmatpush1.msra.mxu0 %v57
  %142 = vmatprep.subr.mxu0 0.0
  %143 = vmatpush2.msra.mxu0 0.0
  %144 = vmatprep.subr.mxu0 0.0
  %145 = vmatpush2.msra.mxu0 0.0
  %146 = vmatprep.subr.mxu0 0.0
  %147 = vmatpush2.msra.mxu0 0.0
  %148 = vmatprep.subr.mxu0 0.0
  %149 = vmatpush2.msra.mxu0 0.0
  %150 = vmatprep.subr.mxu0 0.0
  %151 = vmatpush2.msra.mxu0 0.0
  %152 = vmatprep.subr.mxu0 0.0
  %153 = vmatpush2.msra.mxu0 0.0
  %154 = vmatprep.subr.mxu0 0.0
  %155 = vmatpush2.msra.mxu0 0.0
  %156 = vmatprep.subr.mxu0 0.0
  %157 = vmatpush2.msra.mxu0 0.0
  %158 = vmatprep.subr.mxu0 0.0
  %159 = vmatpush2.msra.mxu0 0.0
  %160 = vmatprep.subr.mxu0 0.0
  %161 = vmatpush2.msra.mxu0 0.0
  %162 = vmatprep.subr.mxu0 0.0
  %163 = vmatpush2.msra.mxu0 0.0
  %164 = vmatprep.subr.mxu0 0.0
  %165 = vmatpush2.msra.mxu0 0.0
  %166 = vmatprep.subr.mxu0 0.0
  %167 = vmatpush2.msra.mxu0 %v76
  %168 = vmatprep.subr.mxu0 0.0
  %169 = vmatpush2.msra.mxu0 %v75
  %170 = vmatprep.subr.mxu0 0.0
  %171 = vmatpush2.msra.mxu0 %v74
  %172 = vmatprep.subr.mxu0 0.0
  %173 = vmatpush2.msra.mxu0 %v73
  %174 = vmatprep.mubr.f32.mxu0 %v87
  %175 = vmatmul.mubr.f32.gmra.mxu0 %v41
  %v176 = vpop.f32.mrf.mxu0
  %v177 = vadd.f32 %v83, %v176
  %v178 = vpop.f32.mrf.mxu0
  %179 = vmatprep.mubr.f32.mxu0 %v90
  %180 = vmatmul.mubr.f32.gmra.mxu0 %v43
  %v181 = vpop.f32.mrf.mxu0
  %v182 = vadd.f32 %v83, %v181
  %v183 = vpop.f32.mrf.mxu0
  %184 = vmatprep.mubr.f32.mxu0 %v93
  %185 = vmatmul.mubr.f32.gmra.mxu0 %v45
  %v186 = vpop.f32.mrf.mxu0
  %v187 = vadd.f32 %v83, %v186
  %v188 = vpop.f32.mrf.mxu0
  %189 = vmatprep.mubr.f32.mxu0 %v96
  %190 = vmatmul.mubr.f32.gmra.mxu0 %v47
  %v191 = vpop.f32.mrf.mxu0
  %v192 = vadd.f32 %v83, %v191
  %v193 = vpop.f32.mrf.mxu0
  %194 = vmatprep.mubr.f32.mxu0 %v99
  %195 = vmatmul.mubr.f32.gmra.mxu0 %v49
  %v196 = vpop.f32.mrf.mxu0
  %v197 = vadd.f32 %v83, %v196
  %v198 = vpop.f32.mrf.mxu0
  %199 = vmatprep.mubr.f32.mxu0 %v102
  %200 = vmatmul.mubr.f32.gmra.mxu0 %v51
  %v201 = vpop.f32.mrf.mxu0
  %v202 = vadd.f32 %v83, %v201
  %v203 = vpop.f32.mrf.mxu0
  %204 = vmatprep.mubr.f32.mxu0 %v105
  %205 = vmatmul.mubr.f32.gmra.mxu0 %v53
  %v206 = vpop.f32.mrf.mxu0
  %v207 = vadd.f32 %v83, %v206
  %v208 = vpop.f32.mrf.mxu0
  %209 = vmatprep.mubr.f32.mxu0 %v108
  %210 = vmatmul.mubr.f32.gmra.mxu0 %v55
  %v211 = vpop.f32.mrf.mxu0
  %v212 = vadd.f32 %v83, %v211
  %v213 = vpop.f32.mrf.mxu0
  %214 = vdwg.mxu0
  %vm215 = vcmask 39936
  %v217 = vsel %vm215, 0.0, 0
  %vm219 = vcmask 1044480
  %v221 = vsel %vm219, %v77, 0
  %223 = vmatprep.subr.mxu0 0.0
  %224 = vmatpush1.msra.mxu0 0.0
  %225 = vmatprep.subr.mxu0 0.0
  %226 = vmatpush1.msra.mxu0 0.0
  %227 = vmatprep.subr.mxu0 0.0
  %228 = vmatpush1.msra.mxu0 0.0
  %229 = vmatprep.subr.mxu0 0.0
  %230 = vmatpush1.msra.mxu0 0.0
  %231 = vmatprep.subr.mxu0 0.0
  %232 = vmatpush1.msra.mxu0 0.0
  %233 = vmatprep.subr.mxu0 0.0
  %234 = vmatpush1.msra.mxu0 0.0
  %235 = vmatprep.subr.mxu0 0.0
  %236 = vmatpush1.msra.mxu0 0.0
  %237 = vmatprep.subr.mxu0 0.0
  %238 = vmatpush1.msra.mxu0 0.0
  %239 = vmatprep.subr.mxu0 0.0
  %240 = vmatpush1.msra.mxu0 0.0
  %241 = vmatprep.subr.mxu0 0.0
  %242 = vmatpush1.msra.mxu0 0.0
  %243 = vmatprep.subr.mxu0 0.0
  %244 = vmatpush1.msra.mxu0 0.0
  %245 = vmatprep.subr.mxu0 0.0
  %246 = vmatpush1.msra.mxu0 0.0
  %247 = vmatprep.subr.mxu0 0.0
  %248 = vmatpush1.msra.mxu0 0.0
  %249 = vmatprep.subr.mxu0 0.0
  %250 = vmatpush1.msra.mxu0 0.0
  %251 = vmatprep.subr.mxu0 0.0
  %252 = vmatpush1.msra.mxu0 0.0
  %253 = vmatprep.subr.mxu0 0.0
  %254 = vmatpush1.msra.mxu0 %v221
  %255 = vmatprep.subr.mxu0 0.0
  %256 = vmatpush2.msra.mxu0 0.0
  %257 = vmatprep.subr.mxu0 0.0
  %258 = vmatpush2.msra.mxu0 0.0
  %259 = vmatprep.subr.mxu0 0.0
  %260 = vmatpush2.msra.mxu0 0.0
  %261 = vmatprep.subr.mxu0 0.0
  %262 = vmatpush2.msra.mxu0 0.0
  %263 = vmatprep.subr.mxu0 0.0
  %264 = vmatpush2.msra.mxu0 0.0
  %265 = vmatprep.subr.mxu0 0.0
  %266 = vmatpush2.msra.mxu0 0.0
  %267 = vmatprep.subr.mxu0 0.0
  %268 = vmatpush2.msra.mxu0 0.0
  %269 = vmatprep.subr.mxu0 0.0
  %270 = vmatpush2.msra.mxu0 0.0
  %271 = vmatprep.subr.mxu0 0.0
  %272 = vmatpush2.msra.mxu0 0.0
  %273 = vmatprep.subr.mxu0 0.0
  %274 = vmatpush2.msra.mxu0 0.0
  %275 = vmatprep.subr.mxu0 0.0
  %276 = vmatpush2.msra.mxu0 0.0
  %277 = vmatprep.subr.mxu0 0.0
  %278 = vmatpush2.msra.mxu0 0.0
  %279 = vmatprep.subr.mxu0 0.0
  %280 = vmatpush2.msra.mxu0 0.0
  %281 = vmatprep.subr.mxu0 0.0
  %282 = vmatpush2.msra.mxu0 0.0
  %283 = vmatprep.subr.mxu0 0.0
  %284 = vmatpush2.msra.mxu0 0.0
  %285 = vmatprep.subr.mxu0 0.0
  %286 = vmatpush2.msra.mxu0 0.0
  %287 = vmatprep.mubr.f32.mxu0 0.0
  %288 = vmatmul.mubr.f32.gmra.mxu0 %v217
  %v289 = vpop.f32.mrf.mxu0
  %v290 = vadd.f32 0.0, %v289
  %v291 = vpop.f32.mrf.mxu0
  %292 = vdwg.mxu0
  %v293 = vadd.f32 %v177, %v290
  %v294 = vxor.u32 %v293, 2147483648
  %v295 = vmul.f32 %v294, 1.442695
  %v296 = vpow.pop %v295
  %v297 = vadd.f32 %v296, 1.0
  %v298 = vrcp.pop %v297
  %v299 = vmul.f32 1.0, %v298
  %v300 = vtanh.pop %v293
  %v301 = vmul.f32 %v299, 0.0
  %303 = vrot.lane.b32.xlu0 %v300, 113
  %v304 = vpop.permute.xlu0 %303
  %v306 = vmul.f32 %v299, %v304
  %308 = vrot.lane.b32.xlu0 %v306, 5
  %v309 = vpop.permute.xlu0 %308
  %v311 = vadd.f32 %v301, %v309
  %v312 = vtanh.pop %v311
  %314 = vrot.lane.b32.xlu0 %v312, 5
  %v315 = vpop.permute.xlu0 %314
  %v317 = vmul.f32 %v299, %v315
  %319 = vrot.lane.b32.xlu0 %v317, 118
  %v320 = vpop.permute.xlu0 %319
  %v321 = vsel %vm215, %v320, 0
  %323 = vmatprep.subr.mxu0 0.0
  %324 = vmatpush1.msra.mxu0 0.0
  %325 = vmatprep.subr.mxu0 0.0
  %326 = vmatpush1.msra.mxu0 0.0
  %327 = vmatprep.subr.mxu0 0.0
  %328 = vmatpush1.msra.mxu0 0.0
  %329 = vmatprep.subr.mxu0 0.0
  %330 = vmatpush1.msra.mxu0 0.0
  %331 = vmatprep.subr.mxu0 0.0
  %332 = vmatpush1.msra.mxu0 0.0
  %333 = vmatprep.subr.mxu0 0.0
  %334 = vmatpush1.msra.mxu0 0.0
  %335 = vmatprep.subr.mxu0 0.0
  %336 = vmatpush1.msra.mxu0 0.0
  %337 = vmatprep.subr.mxu0 0.0
  %338 = vmatpush1.msra.mxu0 0.0
  %339 = vmatprep.subr.mxu0 0.0
  %340 = vmatpush1.msra.mxu0 0.0
  %341 = vmatprep.subr.mxu0 0.0
  %342 = vmatpush1.msra.mxu0 0.0
  %343 = vmatprep.subr.mxu0 0.0
  %344 = vmatpush1.msra.mxu0 0.0
  %345 = vmatprep.subr.mxu0 0.0
  %346 = vmatpush1.msra.mxu0 0.0
  %347 = vmatprep.subr.mxu0 0.0
  %348 = vmatpush1.msra.mxu0 0.0
  %349 = vmatprep.subr.mxu0 0.0
  %350 = vmatpush1.msra.mxu0 0.0
  %351 = vmatprep.subr.mxu0 0.0
  %352 = vmatpush1.msra.mxu0 0.0
  %353 = vmatprep.subr.mxu0 0.0
  %354 = vmatpush1.msra.mxu0 %v221
  %355 = vmatprep.subr.mxu0 0.0
  %356 = vmatpush2.msra.mxu0 0.0
  %357 = vmatprep.subr.mxu0 0.0
  %358 = vmatpush2.msra.mxu0 0.0
  %359 = vmatprep.subr.mxu0 0.0
  %360 = vmatpush2.msra.mxu0 0.0
  %361 = vmatprep.subr.mxu0 0.0
  %362 = vmatpush2.msra.mxu0 0.0
  %363 = vmatprep.subr.mxu0 0.0
  %364 = vmatpush2.msra.mxu0 0.0
  %365 = vmatprep.subr.mxu0 0.0
  %366 = vmatpush2.msra.mxu0 0.0
  %367 = vmatprep.subr.mxu0 0.0
  %368 = vmatpush2.msra.mxu0 0.0
  %369 = vmatprep.subr.mxu0 0.0
  %370 = vmatpush2.msra.mxu0 0.0
  %371 = vmatprep.subr.mxu0 0.0
  %372 = vmatpush2.msra.mxu0 0.0
  %373 = vmatprep.subr.mxu0 0.0
  %374 = vmatpush2.msra.mxu0 0.0
  %375 = vmatprep.subr.mxu0 0.0
  %376 = vmatpush2.msra.mxu0 0.0
  %377 = vmatprep.subr.mxu0 0.0
  %378 = vmatpush2.msra.mxu0 0.0
  %379 = vmatprep.subr.mxu0 0.0
  %380 = vmatpush2.msra.mxu0 0.0
  %381 = vmatprep.subr.mxu0 0.0
  %382 = vmatpush2.msra.mxu0 0.0
  %383 = vmatprep.subr.mxu0 0.0
  %384 = vmatpush2.msra.mxu0 0.0
  %385 = vmatprep.subr.mxu0 0.0
  %386 = vmatpush2.msra.mxu0 0.0
  %387 = vmatprep.mubr.f32.mxu0 0.0
  %388 = vmatmul.mubr.f32.gmra.mxu0 %v321
  %v389 = vpop.f32.mrf.mxu0
  %v390 = vadd.f32 0.0, %v389
  %v391 = vpop.f32.mrf.mxu0
  %392 = vdwg.mxu0
  %v393 = vadd.f32 %v182, %v390
  %v394 = vxor.u32 %v393, 2147483648
  %v395 = vmul.f32 %v394, 1.442695
  %v396 = vpow.pop %v395
  %v397 = vadd.f32 %v396, 1.0
  %v398 = vrcp.pop %v397
  %v399 = vmul.f32 1.0, %v398
  %v400 = vtanh.pop %v393
  %v401 = vmul.f32 %v399, %v311
  %403 = vrot.lane.b32.xlu0 %v400, 113
  %v404 = vpop.permute.xlu0 %403
  %v406 = vmul.f32 %v399, %v404
  %408 = vrot.lane.b32.xlu0 %v406, 5
  %v409 = vpop.permute.xlu0 %408
  %v411 = vadd.f32 %v401, %v409
  %v412 = vtanh.pop %v411
  %414 = vrot.lane.b32.xlu0 %v412, 5
  %v415 = vpop.permute.xlu0 %414
  %v417 = vmul.f32 %v399, %v415
  %419 = vrot.lane.b32.xlu0 %v417, 118
  %v420 = vpop.permute.xlu0 %419
  %v421 = vsel %vm215, %v420, 0
  %423 = vmatprep.subr.mxu0 0.0
  %424 = vmatpush1.msra.mxu0 0.0
  %425 = vmatprep.subr.mxu0 0.0
  %426 = vmatpush1.msra.mxu0 0.0
  %427 = vmatprep.subr.mxu0 0.0
  %428 = vmatpush1.msra.mxu0 0.0
  %429 = vmatprep.subr.mxu0 0.0
  %430 = vmatpush1.msra.mxu0 0.0
  %431 = vmatprep.subr.mxu0 0.0
  %432 = vmatpush1.msra.mxu0 0.0
  %433 = vmatprep.subr.mxu0 0.0
  %434 = vmatpush1.msra.mxu0 0.0
  %435 = vmatprep.subr.mxu0 0.0
  %436 = vmatpush1.msra.mxu0 0.0
  %437 = vmatprep.subr.mxu0 0.0
  %438 = vmatpush1.msra.mxu0 0.0
  %439 = vmatprep.subr.mxu0 0.0
  %440 = vmatpush1.msra.mxu0 0.0
  %441 = vmatprep.subr.mxu0 0.0
  %442 = vmatpush1.msra.mxu0 0.0
  %443 = vmatprep.subr.mxu0 0.0
  %444 = vmatpush1.msra.mxu0 0.0
  %445 = vmatprep.subr.mxu0 0.0
  %446 = vmatpush1.msra.mxu0 0.0
  %447 = vmatprep.subr.mxu0 0.0
  %448 = vmatpush1.msra.mxu0 0.0
  %449 = vmatprep.subr.mxu0 0.0
  %450 = vmatpush1.msra.mxu0 0.0
  %451 = vmatprep.subr.mxu0 0.0
  %452 = vmatpush1.msra.mxu0 0.0
  %453 = vmatprep.subr.mxu0 0.0
  %454 = vmatpush1.msra.mxu0 %v221
  %455 = vmatprep.subr.mxu0 0.0
  %456 = vmatpush2.msra.mxu0 0.0
  %457 = vmatprep.subr.mxu0 0.0
  %458 = vmatpush2.msra.mxu0 0.0
  %459 = vmatprep.subr.mxu0 0.0
  %460 = vmatpush2.msra.mxu0 0.0
  %461 = vmatprep.subr.mxu0 0.0
  %462 = vmatpush2.msra.mxu0 0.0
  %463 = vmatprep.subr.mxu0 0.0
  %464 = vmatpush2.msra.mxu0 0.0
  %465 = vmatprep.subr.mxu0 0.0
  %466 = vmatpush2.msra.mxu0 0.0
  %467 = vmatprep.subr.mxu0 0.0
  %468 = vmatpush2.msra.mxu0 0.0
  %469 = vmatprep.subr.mxu0 0.0
  %470 = vmatpush2.msra.mxu0 0.0
  %471 = vmatprep.subr.mxu0 0.0
  %472 = vmatpush2.msra.mxu0 0.0
  %473 = vmatprep.subr.mxu0 0.0
  %474 = vmatpush2.msra.mxu0 0.0
  %475 = vmatprep.subr.mxu0 0.0
  %476 = vmatpush2.msra.mxu0 0.0
  %477 = vmatprep.subr.mxu0 0.0
  %478 = vmatpush2.msra.mxu0 0.0
  %479 = vmatprep.subr.mxu0 0.0
  %480 = vmatpush2.msra.mxu0 0.0
  %481 = vmatprep.subr.mxu0 0.0
  %482 = vmatpush2.msra.mxu0 0.0
  %483 = vmatprep.subr.mxu0 0.0
  %484 = vmatpush2.msra.mxu0 0.0
  %485 = vmatprep.subr.mxu0 0.0
  %486 = vmatpush2.msra.mxu0 0.0
  %487 = vmatprep.mubr.f32.mxu0 0.0
  %488 = vmatmul.mubr.f32.gmra.mxu0 %v421
  %v489 = vpop.f32.mrf.mxu0
  %v490 = vadd.f32 0.0, %v489
  %v491 = vpop.f32.mrf.mxu0
  %492 = vdwg.mxu0
  %v493 = vadd.f32 %v187, %v490
  %v494 = vxor.u32 %v493, 2147483648
  %v495 = vmul.f32 %v494, 1.442695
  %v496 = vpow.pop %v495
  %v497 = vadd.f32 %v496, 1.0
  %v498 = vrcp.pop %v497
  %v499 = vmul.f32 1.0, %v498
  %v500 = vtanh.pop %v493
  %v501 = vmul.f32 %v499, %v411
  %503 = vrot.lane.b32.xlu0 %v500, 113
  %v504 = vpop.permute.xlu0 %503
  %v506 = vmul.f32 %v499, %v504
  %508 = vrot.lane.b32.xlu0 %v506, 5
  %v509 = vpop.permute.xlu0 %508
  %v511 = vadd.f32 %v501, %v509
  %v512 = vtanh.pop %v511
  %514 = vrot.lane.b32.xlu0 %v512, 5
  %v515 = vpop.permute.xlu0 %514
  %v517 = vmul.f32 %v499, %v515
  %519 = vrot.lane.b32.xlu0 %v517, 118
  %v520 = vpop.permute.xlu0 %519
  %v521 = vsel %vm215, %v520, 0
  %523 = vmatprep.subr.mxu0 0.0
  %524 = vmatpush1.msra.mxu0 0.0
  %525 = vmatprep.subr.mxu0 0.0
  %526 = vmatpush1.msra.mxu0 0.0
  %527 = vmatprep.subr.mxu0 0.0
  %528 = vmatpush1.msra.mxu0 0.0
  %529 = vmatprep.subr.mxu0 0.0
  %530 = vmatpush1.msra.mxu0 0.0
  %531 = vmatprep.subr.mxu0 0.0
  %532 = vmatpush1.msra.mxu0 0.0
  %533 = vmatprep.subr.mxu0 0.0
  %534 = vmatpush1.msra.mxu0 0.0
  %535 = vmatprep.subr.mxu0 0.0
  %536 = vmatpush1.msra.mxu0 0.0
  %537 = vmatprep.subr.mxu0 0.0
  %538 = vmatpush1.msra.mxu0 0.0
  %539 = vmatprep.subr.mxu0 0.0
  %540 = vmatpush1.msra.mxu0 0.0
  %541 = vmatprep.subr.mxu0 0.0
  %542 = vmatpush1.msra.mxu0 0.0
  %543 = vmatprep.subr.mxu0 0.0
  %544 = vmatpush1.msra.mxu0 0.0
  %545 = vmatprep.subr.mxu0 0.0
  %546 = vmatpush1.msra.mxu0 0.0
  %547 = vmatprep.subr.mxu0 0.0
  %548 = vmatpush1.msra.mxu0 0.0
  %549 = vmatprep.subr.mxu0 0.0
  %550 = vmatpush1.msra.mxu0 0.0
  %551 = vmatprep.subr.mxu0 0.0
  %552 = vmatpush1.msra.mxu0 0.0
  %553 = vmatprep.subr.mxu0 0.0
  %554 = vmatpush1.msra.mxu0 %v221
  %555 = vmatprep.subr.mxu0 0.0
  %556 = vmatpush2.msra.mxu0 0.0
  %557 = vmatprep.subr.mxu0 0.0
  %558 = vmatpush2.msra.mxu0 0.0
  %559 = vmatprep.subr.mxu0 0.0
  %560 = vmatpush2.msra.mxu0 0.0
  %561 = vmatprep.subr.mxu0 0.0
  %562 = vmatpush2.msra.mxu0 0.0
  %563 = vmatprep.subr.mxu0 0.0
  %564 = vmatpush2.msra.mxu0 0.0
  %565 = vmatprep.subr.mxu0 0.0
  %566 = vmatpush2.msra.mxu0 0.0
  %567 = vmatprep.subr.mxu0 0.0
  %568 = vmatpush2.msra.mxu0 0.0
  %569 = vmatprep.subr.mxu0 0.0
  %570 = vmatpush2.msra.mxu0 0.0
  %571 = vmatprep.subr.mxu0 0.0
  %572 = vmatpush2.msra.mxu0 0.0
  %573 = vmatprep.subr.mxu0 0.0
  %574 = vmatpush2.msra.mxu0 0.0
  %575 = vmatprep.subr.mxu0 0.0
  %576 = vmatpush2.msra.mxu0 0.0
  %577 = vmatprep.subr.mxu0 0.0
  %578 = vmatpush2.msra.mxu0 0.0
  %579 = vmatprep.subr.mxu0 0.0
  %580 = vmatpush2.msra.mxu0 0.0
  %581 = vmatprep.subr.mxu0 0.0
  %582 = vmatpush2.msra.mxu0 0.0
  %583 = vmatprep.subr.mxu0 0.0
  %584 = vmatpush2.msra.mxu0 0.0
  %585 = vmatprep.subr.mxu0 0.0
  %586 = vmatpush2.msra.mxu0 0.0
  %587 = vmatprep.mubr.f32.mxu0 0.0
  %588 = vmatmul.mubr.f32.gmra.mxu0 %v521
  %v589 = vpop.f32.mrf.mxu0
  %v590 = vadd.f32 0.0, %v589
  %v591 = vpop.f32.mrf.mxu0
  %592 = vdwg.mxu0
  %v593 = vadd.f32 %v192, %v590
  %v594 = vxor.u32 %v593, 2147483648
  %v595 = vmul.f32 %v594, 1.442695
  %v596 = vpow.pop %v595
  %v597 = vadd.f32 %v596, 1.0
  %v598 = vrcp.pop %v597
  %v599 = vmul.f32 1.0, %v598
  %v600 = vtanh.pop %v593
  %v601 = vmul.f32 %v599, %v511
  %603 = vrot.lane.b32.xlu0 %v600, 113
  %v604 = vpop.permute.xlu0 %603
  %v606 = vmul.f32 %v599, %v604
  %608 = vrot.lane.b32.xlu0 %v606, 5
  %v609 = vpop.permute.xlu0 %608
  %v611 = vadd.f32 %v601, %v609
  %v612 = vtanh.pop %v611
  %614 = vrot.lane.b32.xlu0 %v612, 5
  %v615 = vpop.permute.xlu0 %614
  %v617 = vmul.f32 %v599, %v615
  %619 = vrot.lane.b32.xlu0 %v617, 118
  %v620 = vpop.permute.xlu0 %619
  %v621 = vsel %vm215, %v620, 0
  %623 = vmatprep.subr.mxu0 0.0
  %624 = vmatpush1.msra.mxu0 0.0
  %625 = vmatprep.subr.mxu0 0.0
  %626 = vmatpush1.msra.mxu0 0.0
  %627 = vmatprep.subr.mxu0 0.0
  %628 = vmatpush1.msra.mxu0 0.0
  %629 = vmatprep.subr.mxu0 0.0
  %630 = vmatpush1.msra.mxu0 0.0
  %631 = vmatprep.subr.mxu0 0.0
  %632 = vmatpush1.msra.mxu0 0.0
  %633 = vmatprep.subr.mxu0 0.0
  %634 = vmatpush1.msra.mxu0 0.0
  %635 = vmatprep.subr.mxu0 0.0
  %636 = vmatpush1.msra.mxu0 0.0
  %637 = vmatprep.subr.mxu0 0.0
  %638 = vmatpush1.msra.mxu0 0.0
  %639 = vmatprep.subr.mxu0 0.0
  %640 = vmatpush1.msra.mxu0 0.0
  %641 = vmatprep.subr.mxu0 0.0
  %642 = vmatpush1.msra.mxu0 0.0
  %643 = vmatprep.subr.mxu0 0.0
  %644 = vmatpush1.msra.mxu0 0.0
  %645 = vmatprep.subr.mxu0 0.0
  %646 = vmatpush1.msra.mxu0 0.0
  %647 = vmatprep.subr.mxu0 0.0
  %648 = vmatpush1.msra.mxu0 0.0
  %649 = vmatprep.subr.mxu0 0.0
  %650 = vmatpush1.msra.mxu0 0.0
  %651 = vmatprep.subr.mxu0 0.0
  %652 = vmatpush1.msra.mxu0 0.0
  %653 = vmatprep.subr.mxu0 0.0
  %654 = vmatpush1.msra.mxu0 %v221
  %655 = vmatprep.subr.mxu0 0.0
  %656 = vmatpush2.msra.mxu0 0.0
  %657 = vmatprep.subr.mxu0 0.0
  %658 = vmatpush2.msra.mxu0 0.0
  %659 = vmatprep.subr.mxu0 0.0
  %660 = vmatpush2.msra.mxu0 0.0
  %661 = vmatprep.subr.mxu0 0.0
  %662 = vmatpush2.msra.mxu0 0.0
  %663 = vmatprep.subr.mxu0 0.0
  %664 = vmatpush2.msra.mxu0 0.0
  %665 = vmatprep.subr.mxu0 0.0
  %666 = vmatpush2.msra.mxu0 0.0
  %667 = vmatprep.subr.mxu0 0.0
  %668 = vmatpush2.msra.mxu0 0.0
  %669 = vmatprep.subr.mxu0 0.0
  %670 = vmatpush2.msra.mxu0 0.0
  %671 = vmatprep.subr.mxu0 0.0
  %672 = vmatpush2.msra.mxu0 0.0
  %673 = vmatprep.subr.mxu0 0.0
  %674 = vmatpush2.msra.mxu0 0.0
  %675 = vmatprep.subr.mxu0 0.0
  %676 = vmatpush2.msra.mxu0 0.0
  %677 = vmatprep.subr.mxu0 0.0
  %678 = vmatpush2.msra.mxu0 0.0
  %679 = vmatprep.subr.mxu0 0.0
  %680 = vmatpush2.msra.mxu0 0.0
  %681 = vmatprep.subr.mxu0 0.0
  %682 = vmatpush2.msra.mxu0 0.0
  %683 = vmatprep.subr.mxu0 0.0
  %684 = vmatpush2.msra.mxu0 0.0
  %685 = vmatprep.subr.mxu0 0.0
  %686 = vmatpush2.msra.mxu0 0.0
  %687 = vmatprep.mubr.f32.mxu0 0.0
  %688 = vmatmul.mubr.f32.gmra.mxu0 %v621
  %v689 = vpop.f32.mrf.mxu0
  %v690 = vadd.f32 0.0, %v689
  %v691 = vpop.f32.mrf.mxu0
  %692 = vdwg.mxu0
  %v693 = vadd.f32 %v197, %v690
  %v694 = vxor.u32 %v693, 2147483648
  %v695 = vmul.f32 %v694, 1.442695
  %v696 = vpow.pop %v695
  %v697 = vadd.f32 %v696, 1.0
  %v698 = vrcp.pop %v697
  %v699 = vmul.f32 1.0, %v698
  %v700 = vtanh.pop %v693
  %v701 = vmul.f32 %v699, %v611
  %703 = vrot.lane.b32.xlu0 %v700, 113
  %v704 = vpop.permute.xlu0 %703
  %v706 = vmul.f32 %v699, %v704
  %708 = vrot.lane.b32.xlu0 %v706, 5
  %v709 = vpop.permute.xlu0 %708
  %v711 = vadd.f32 %v701, %v709
  %v712 = vtanh.pop %v711
  %714 = vrot.lane.b32.xlu0 %v712, 5
  %v715 = vpop.permute.xlu0 %714
  %v717 = vmul.f32 %v699, %v715
  %719 = vrot.lane.b32.xlu0 %v717, 118
  %v720 = vpop.permute.xlu0 %719
  %v721 = vsel %vm215, %v720, 0
  %723 = vmatprep.subr.mxu0 0.0
  %724 = vmatpush1.msra.mxu0 0.0
  %725 = vmatprep.subr.mxu0 0.0
  %726 = vmatpush1.msra.mxu0 0.0
  %727 = vmatprep.subr.mxu0 0.0
  %728 = vmatpush1.msra.mxu0 0.0
  %729 = vmatprep.subr.mxu0 0.0
  %730 = vmatpush1.msra.mxu0 0.0
  %731 = vmatprep.subr.mxu0 0.0
  %732 = vmatpush1.msra.mxu0 0.0
  %733 = vmatprep.subr.mxu0 0.0
  %734 = vmatpush1.msra.mxu0 0.0
  %735 = vmatprep.subr.mxu0 0.0
  %736 = vmatpush1.msra.mxu0 0.0
  %737 = vmatprep.subr.mxu0 0.0
  %738 = vmatpush1.msra.mxu0 0.0
  %739 = vmatprep.subr.mxu0 0.0
  %740 = vmatpush1.msra.mxu0 0.0
  %741 = vmatprep.subr.mxu0 0.0
  %742 = vmatpush1.msra.mxu0 0.0
  %743 = vmatprep.subr.mxu0 0.0
  %744 = vmatpush1.msra.mxu0 0.0
  %745 = vmatprep.subr.mxu0 0.0
  %746 = vmatpush1.msra.mxu0 0.0
  %747 = vmatprep.subr.mxu0 0.0
  %748 = vmatpush1.msra.mxu0 0.0
  %749 = vmatprep.subr.mxu0 0.0
  %750 = vmatpush1.msra.mxu0 0.0
  %751 = vmatprep.subr.mxu0 0.0
  %752 = vmatpush1.msra.mxu0 0.0
  %753 = vmatprep.subr.mxu0 0.0
  %754 = vmatpush1.msra.mxu0 %v221
  %755 = vmatprep.subr.mxu0 0.0
  %756 = vmatpush2.msra.mxu0 0.0
  %757 = vmatprep.subr.mxu0 0.0
  %758 = vmatpush2.msra.mxu0 0.0
  %759 = vmatprep.subr.mxu0 0.0
  %760 = vmatpush2.msra.mxu0 0.0
  %761 = vmatprep.subr.mxu0 0.0
  %762 = vmatpush2.msra.mxu0 0.0
  %763 = vmatprep.subr.mxu0 0.0
  %764 = vmatpush2.msra.mxu0 0.0
  %765 = vmatprep.subr.mxu0 0.0
  %766 = vmatpush2.msra.mxu0 0.0
  %767 = vmatprep.subr.mxu0 0.0
  %768 = vmatpush2.msra.mxu0 0.0
  %769 = vmatprep.subr.mxu0 0.0
  %770 = vmatpush2.msra.mxu0 0.0
  %771 = vmatprep.subr.mxu0 0.0
  %772 = vmatpush2.msra.mxu0 0.0
  %773 = vmatprep.subr.mxu0 0.0
  %774 = vmatpush2.msra.mxu0 0.0
  %775 = vmatprep.subr.mxu0 0.0
  %776 = vmatpush2.msra.mxu0 0.0
  %777 = vmatprep.subr.mxu0 0.0
  %778 = vmatpush2.msra.mxu0 0.0
  %779 = vmatprep.subr.mxu0 0.0
  %780 = vmatpush2.msra.mxu0 0.0
  %781 = vmatprep.subr.mxu0 0.0
  %782 = vmatpush2.msra.mxu0 0.0
  %783 = vmatprep.subr.mxu0 0.0
  %784 = vmatpush2.msra.mxu0 0.0
  %785 = vmatprep.subr.mxu0 0.0
  %786 = vmatpush2.msra.mxu0 0.0
  %787 = vmatprep.mubr.f32.mxu0 0.0
  %788 = vmatmul.mubr.f32.gmra.mxu0 %v721
  %v789 = vpop.f32.mrf.mxu0
  %v790 = vadd.f32 0.0, %v789
  %v791 = vpop.f32.mrf.mxu0
  %792 = vdwg.mxu0
  %v793 = vadd.f32 %v202, %v790
  %v794 = vxor.u32 %v793, 2147483648
  %v795 = vmul.f32 %v794, 1.442695
  %v796 = vpow.pop %v795
  %v797 = vadd.f32 %v796, 1.0
  %v798 = vrcp.pop %v797
  %v799 = vmul.f32 1.0, %v798
  %v800 = vtanh.pop %v793
  %v801 = vmul.f32 %v799, %v711
  %803 = vrot.lane.b32.xlu0 %v800, 113
  %v804 = vpop.permute.xlu0 %803
  %v806 = vmul.f32 %v799, %v804
  %808 = vrot.lane.b32.xlu0 %v806, 5
  %v809 = vpop.permute.xlu0 %808
  %v811 = vadd.f32 %v801, %v809
  %v812 = vtanh.pop %v811
  %814 = vrot.lane.b32.xlu0 %v812, 5
  %v815 = vpop.permute.xlu0 %814
  %v817 = vmul.f32 %v799, %v815
  %819 = vrot.lane.b32.xlu0 %v817, 118
  %v820 = vpop.permute.xlu0 %819
  %v821 = vsel %vm215, %v820, 0
  %823 = vmatprep.subr.mxu0 0.0
  %824 = vmatpush1.msra.mxu0 0.0
  %825 = vmatprep.subr.mxu0 0.0
  %826 = vmatpush1.msra.mxu0 0.0
  %827 = vmatprep.subr.mxu0 0.0
  %828 = vmatpush1.msra.mxu0 0.0
  %829 = vmatprep.subr.mxu0 0.0
  %830 = vmatpush1.msra.mxu0 0.0
  %831 = vmatprep.subr.mxu0 0.0
  %832 = vmatpush1.msra.mxu0 0.0
  %833 = vmatprep.subr.mxu0 0.0
  %834 = vmatpush1.msra.mxu0 0.0
  %835 = vmatprep.subr.mxu0 0.0
  %836 = vmatpush1.msra.mxu0 0.0
  %837 = vmatprep.subr.mxu0 0.0
  %838 = vmatpush1.msra.mxu0 0.0
  %839 = vmatprep.subr.mxu0 0.0
  %840 = vmatpush1.msra.mxu0 0.0
  %841 = vmatprep.subr.mxu0 0.0
  %842 = vmatpush1.msra.mxu0 0.0
  %843 = vmatprep.subr.mxu0 0.0
  %844 = vmatpush1.msra.mxu0 0.0
  %845 = vmatprep.subr.mxu0 0.0
  %846 = vmatpush1.msra.mxu0 0.0
  %847 = vmatprep.subr.mxu0 0.0
  %848 = vmatpush1.msra.mxu0 0.0
  %849 = vmatprep.subr.mxu0 0.0
  %850 = vmatpush1.msra.mxu0 0.0
  %851 = vmatprep.subr.mxu0 0.0
  %852 = vmatpush1.msra.mxu0 0.0
  %853 = vmatprep.subr.mxu0 0.0
  %854 = vmatpush1.msra.mxu0 %v221
  %855 = vmatprep.subr.mxu0 0.0
  %856 = vmatpush2.msra.mxu0 0.0
  %857 = vmatprep.subr.mxu0 0.0
  %858 = vmatpush2.msra.mxu0 0.0
  %859 = vmatprep.subr.mxu0 0.0
  %860 = vmatpush2.msra.mxu0 0.0
  %861 = vmatprep.subr.mxu0 0.0
  %862 = vmatpush2.msra.mxu0 0.0
  %863 = vmatprep.subr.mxu0 0.0
  %864 = vmatpush2.msra.mxu0 0.0
  %865 = vmatprep.subr.mxu0 0.0
  %866 = vmatpush2.msra.mxu0 0.0
  %867 = vmatprep.subr.mxu0 0.0
  %868 = vmatpush2.msra.mxu0 0.0
  %869 = vmatprep.subr.mxu0 0.0
  %870 = vmatpush2.msra.mxu0 0.0
  %871 = vmatprep.subr.mxu0 0.0
  %872 = vmatpush2.msra.mxu0 0.0
  %873 = vmatprep.subr.mxu0 0.0
  %874 = vmatpush2.msra.mxu0 0.0
  %875 = vmatprep.subr.mxu0 0.0
  %876 = vmatpush2.msra.mxu0 0.0
  %877 = vmatprep.subr.mxu0 0.0
  %878 = vmatpush2.msra.mxu0 0.0
  %879 = vmatprep.subr.mxu0 0.0
  %880 = vmatpush2.msra.mxu0 0.0
  %881 = vmatprep.subr.mxu0 0.0
  %882 = vmatpush2.msra.mxu0 0.0
  %883 = vmatprep.subr.mxu0 0.0
  %884 = vmatpush2.msra.mxu0 0.0
  %885 = vmatprep.subr.mxu0 0.0
  %886 = vmatpush2.msra.mxu0 0.0
  %887 = vmatprep.mubr.f32.mxu0 0.0
  %888 = vmatmul.mubr.f32.gmra.mxu0 %v821
  %v889 = vpop.f32.mrf.mxu0
  %v890 = vadd.f32 0.0, %v889
  %v891 = vpop.f32.mrf.mxu0
  %892 = vdwg.mxu0
  %v893 = vadd.f32 %v207, %v890
  %v894 = vxor.u32 %v893, 2147483648
  %v895 = vmul.f32 %v894, 1.442695
  %v896 = vpow.pop %v895
  %v897 = vadd.f32 %v896, 1.0
  %v898 = vrcp.pop %v897
  %v899 = vmul.f32 1.0, %v898
  %v900 = vtanh.pop %v893
  %v901 = vmul.f32 %v899, %v811
  %903 = vrot.lane.b32.xlu0 %v900, 113
  %v904 = vpop.permute.xlu0 %903
  %v906 = vmul.f32 %v899, %v904
  %908 = vrot.lane.b32.xlu0 %v906, 5
  %v909 = vpop.permute.xlu0 %908
  %v911 = vadd.f32 %v901, %v909
  %v912 = vtanh.pop %v911
  %914 = vrot.lane.b32.xlu0 %v912, 5
  %v915 = vpop.permute.xlu0 %914
  %v917 = vmul.f32 %v899, %v915
  %919 = vrot.lane.b32.xlu0 %v917, 118
  %v920 = vpop.permute.xlu0 %919
  %v921 = vsel %vm215, %v920, 0
  %923 = vmatprep.subr.mxu0 0.0
  %924 = vmatpush1.msra.mxu0 0.0
  %925 = vmatprep.subr.mxu0 0.0
  %926 = vmatpush1.msra.mxu0 0.0
  %927 = vmatprep.subr.mxu0 0.0
  %928 = vmatpush1.msra.mxu0 0.0
  %929 = vmatprep.subr.mxu0 0.0
  %930 = vmatpush1.msra.mxu0 0.0
  %931 = vmatprep.subr.mxu0 0.0
  %932 = vmatpush1.msra.mxu0 0.0
  %933 = vmatprep.subr.mxu0 0.0
  %934 = vmatpush1.msra.mxu0 0.0
  %935 = vmatprep.subr.mxu0 0.0
  %936 = vmatpush1.msra.mxu0 0.0
  %937 = vmatprep.subr.mxu0 0.0
  %938 = vmatpush1.msra.mxu0 0.0
  %939 = vmatprep.subr.mxu0 0.0
  %940 = vmatpush1.msra.mxu0 0.0
  %941 = vmatprep.subr.mxu0 0.0
  %942 = vmatpush1.msra.mxu0 0.0
  %943 = vmatprep.subr.mxu0 0.0
  %944 = vmatpush1.msra.mxu0 0.0
  %945 = vmatprep.subr.mxu0 0.0
  %946 = vmatpush1.msra.mxu0 0.0
  %947 = vmatprep.subr.mxu0 0.0
  %948 = vmatpush1.msra.mxu0 0.0
  %949 = vmatprep.subr.mxu0 0.0
  %950 = vmatpush1.msra.mxu0 0.0
  %951 = vmatprep.subr.mxu0 0.0
  %952 = vmatpush1.msra.mxu0 0.0
  %953 = vmatprep.subr.mxu0 0.0
  %954 = vmatpush1.msra.mxu0 %v221
  %955 = vmatprep.subr.mxu0 0.0
  %956 = vmatpush2.msra.mxu0 0.0
  %957 = vmatprep.subr.mxu0 0.0
  %958 = vmatpush2.msra.mxu0 0.0
  %959 = vmatprep.subr.mxu0 0.0
  %960 = vmatpush2.msra.mxu0 0.0
  %961 = vmatprep.subr.mxu0 0.0
  %962 = vmatpush2.msra.mxu0 0.0
  %963 = vmatprep.subr.mxu0 0.0
  %964 = vmatpush2.msra.mxu0 0.0
  %965 = vmatprep.subr.mxu0 0.0
  %966 = vmatpush2.msra.mxu0 0.0
  %967 = vmatprep.subr.mxu0 0.0
  %968 = vmatpush2.msra.mxu0 0.0
  %969 = vmatprep.subr.mxu0 0.0
  %970 = vmatpush2.msra.mxu0 0.0
  %971 = vmatprep.subr.mxu0 0.0
  %972 = vmatpush2.msra.mxu0 0.0
  %973 = vmatprep.subr.mxu0 0.0
  %974 = vmatpush2.msra.mxu0 0.0
  %975 = vmatprep.subr.mxu0 0.0
  %976 = vmatpush2.msra.mxu0 0.0
  %977 = vmatprep.subr.mxu0 0.0
  %978 = vmatpush2.msra.mxu0 0.0
  %979 = vmatprep.subr.mxu0 0.0
  %980 = vmatpush2.msra.mxu0 0.0
  %981 = vmatprep.subr.mxu0 0.0
  %982 = vmatpush2.msra.mxu0 0.0
  %983 = vmatprep.subr.mxu0 0.0
  %984 = vmatpush2.msra.mxu0 0.0
  %985 = vmatprep.subr.mxu0 0.0
  %986 = vmatpush2.msra.mxu0 0.0
  %987 = vmatprep.mubr.f32.mxu0 0.0
  %988 = vmatmul.mubr.f32.gmra.mxu0 %v921
  %v989 = vpop.f32.mrf.mxu0
  %v990 = vadd.f32 0.0, %v989
  %v991 = vpop.f32.mrf.mxu0
  %992 = vdwg.mxu0
  %v993 = vadd.f32 %v212, %v990
  %v994 = vxor.u32 %v993, 2147483648
  %v995 = vmul.f32 %v994, 1.442695
  %v996 = vpow.pop %v995
  %v997 = vadd.f32 %v996, 1.0
  %v998 = vrcp.pop %v997
  %v999 = vmul.f32 1.0, %v998
  %v1000 = vtanh.pop %v993
  %v1001 = vmul.f32 %v999, %v911
  %1003 = vrot.lane.b32.xlu0 %v1000, 113
  %v1004 = vpop.permute.xlu0 %1003
  %v1006 = vmul.f32 %v999, %v1004
  %1008 = vrot.lane.b32.xlu0 %v1006, 5
  %v1009 = vpop.permute.xlu0 %1008
  %v1011 = vadd.f32 %v1001, %v1009
  %v1012 = vtanh.pop %v1011
  %1014 = vrot.lane.b32.xlu0 %v1012, 5
  %v1015 = vpop.permute.xlu0 %1014
  %v1017 = vmul.f32 %v999, %v1015
  %v1018 = vld [vmem:[%s5] sm:$0x1f]
  %v1019 = vld [vmem:[%s6] sm:$0xff]
  %v1020 = vld [vmem:[%s6 + $0x8] sm:$0xff]
  %v1021 = vld [vmem:[%s6 + $0x10] sm:$0xff]
  %v1022 = vld [vmem:[%s6 + $0x18] sm:$0xff]
  %v1023 = vld [vmem:[%s7] sm:$0x1]
  %v1025 = vlaneseq
  %v1026 = vshrl.u32 %v1025, 7
  %v1027 = vsub.s32 0, %v1026
  %v1028 = vrot.slane %v1023, %v1027
  %1031 = vrot.lane.b32.xlu0 %v1017, 118
  %v1032 = vpop.permute.xlu0 %1031
  %v1033 = vsel %vm215, %v1032, 0
  %v1036 = vsel %vm219, %v1018, 0
  %1038 = vmatprep.subr.mxu0 0.0
  %1039 = vmatpush1.msra.mxu0 0.0
  %1040 = vmatprep.subr.mxu0 0.0
  %1041 = vmatpush1.msra.mxu0 0.0
  %1042 = vmatprep.subr.mxu0 0.0
  %1043 = vmatpush1.msra.mxu0 0.0
  %1044 = vmatprep.subr.mxu0 0.0
  %1045 = vmatpush1.msra.mxu0 0.0
  %1046 = vmatprep.subr.mxu0 0.0
  %1047 = vmatpush1.msra.mxu0 0.0
  %1048 = vmatprep.subr.mxu0 0.0
  %1049 = vmatpush1.msra.mxu0 0.0
  %1050 = vmatprep.subr.mxu0 0.0
  %1051 = vmatpush1.msra.mxu0 0.0
  %1052 = vmatprep.subr.mxu0 0.0
  %1053 = vmatpush1.msra.mxu0 0.0
  %1054 = vmatprep.subr.mxu0 0.0
  %1055 = vmatpush1.msra.mxu0 0.0
  %1056 = vmatprep.subr.mxu0 0.0
  %1057 = vmatpush1.msra.mxu0 0.0
  %1058 = vmatprep.subr.mxu0 0.0
  %1059 = vmatpush1.msra.mxu0 0.0
  %1060 = vmatprep.subr.mxu0 0.0
  %1061 = vmatpush1.msra.mxu0 0.0
  %1062 = vmatprep.subr.mxu0 0.0
  %1063 = vmatpush1.msra.mxu0 0.0
  %1064 = vmatprep.subr.mxu0 0.0
  %1065 = vmatpush1.msra.mxu0 0.0
  %1066 = vmatprep.subr.mxu0 0.0
  %1067 = vmatpush1.msra.mxu0 0.0
  %1068 = vmatprep.subr.mxu0 0.0
  %1069 = vmatpush1.msra.mxu0 %v1036
  %1070 = vmatprep.subr.mxu0 0.0
  %1071 = vmatpush2.msra.mxu0 0.0
  %1072 = vmatprep.subr.mxu0 0.0
  %1073 = vmatpush2.msra.mxu0 0.0
  %1074 = vmatprep.subr.mxu0 0.0
  %1075 = vmatpush2.msra.mxu0 0.0
  %1076 = vmatprep.subr.mxu0 0.0
  %1077 = vmatpush2.msra.mxu0 0.0
  %1078 = vmatprep.subr.mxu0 0.0
  %1079 = vmatpush2.msra.mxu0 0.0
  %1080 = vmatprep.subr.mxu0 0.0
  %1081 = vmatpush2.msra.mxu0 0.0
  %1082 = vmatprep.subr.mxu0 0.0
  %1083 = vmatpush2.msra.mxu0 0.0
  %1084 = vmatprep.subr.mxu0 0.0
  %1085 = vmatpush2.msra.mxu0 0.0
  %1086 = vmatprep.subr.mxu0 0.0
  %1087 = vmatpush2.msra.mxu0 0.0
  %1088 = vmatprep.subr.mxu0 0.0
  %1089 = vmatpush2.msra.mxu0 0.0
  %1090 = vmatprep.subr.mxu0 0.0
  %1091 = vmatpush2.msra.mxu0 0.0
  %1092 = vmatprep.subr.mxu0 0.0
  %1093 = vmatpush2.msra.mxu0 0.0
  %1094 = vmatprep.subr.mxu0 0.0
  %1095 = vmatpush2.msra.mxu0 0.0
  %1096 = vmatprep.subr.mxu0 0.0
  %1097 = vmatpush2.msra.mxu0 0.0
  %1098 = vmatprep.subr.mxu0 0.0
  %1099 = vmatpush2.msra.mxu0 0.0
  %1100 = vmatprep.subr.mxu0 0.0
  %1101 = vmatpush2.msra.mxu0 0.0
  %1102 = vmatprep.mubr.f32.mxu0 0.0
  %1103 = vmatmul.mubr.f32.gmra.mxu0 %v1033
  %v1104 = vpop.f32.mrf.mxu0
  %v1105 = vadd.f32 %v1028, %v1104
  %v1106 = vpop.f32.mrf.mxu0
  %1107 = vdwg.mxu0
  %v1108 = vsel %vm85, 0.0, 0
  %1110 = vmatprep.subr.mxu0 0.0
  %1111 = vmatpush1.msra.mxu0 0.0
  %1112 = vmatprep.subr.mxu0 0.0
  %1113 = vmatpush1.msra.mxu0 0.0
  %1114 = vmatprep.subr.mxu0 0.0
  %1115 = vmatpush1.msra.mxu0 0.0
  %1116 = vmatprep.subr.mxu0 0.0
  %1117 = vmatpush1.msra.mxu0 0.0
  %1118 = vmatprep.subr.mxu0 0.0
  %1119 = vmatpush1.msra.mxu0 0.0
  %1120 = vmatprep.subr.mxu0 0.0
  %1121 = vmatpush1.msra.mxu0 0.0
  %1122 = vmatprep.subr.mxu0 0.0
  %1123 = vmatpush1.msra.mxu0 0.0
  %1124 = vmatprep.subr.mxu0 0.0
  %1125 = vmatpush1.msra.mxu0 0.0
  %1126 = vmatprep.subr.mxu0 0.0
  %1127 = vmatpush1.msra.mxu0 0.0
  %1128 = vmatprep.subr.mxu0 0.0
  %1129 = vmatpush1.msra.mxu0 0.0
  %1130 = vmatprep.subr.mxu0 0.0
  %1131 = vmatpush1.msra.mxu0 0.0
  %1132 = vmatprep.subr.mxu0 0.0
  %1133 = vmatpush1.msra.mxu0 0.0
  %1134 = vmatprep.subr.mxu0 0.0
  %1135 = vmatpush1.msra.mxu0 %v1022
  %1136 = vmatprep.subr.mxu0 0.0
  %1137 = vmatpush1.msra.mxu0 %v1021
  %1138 = vmatprep.subr.mxu0 0.0
  %1139 = vmatpush1.msra.mxu0 %v1020
  %1140 = vmatprep.subr.mxu0 0.0
  %1141 = vmatpush1.msra.mxu0 %v1019
  %1142 = vmatprep.subr.mxu0 0.0
  %1143 = vmatpush2.msra.mxu0 0.0
  %1144 = vmatprep.subr.mxu0 0.0
  %1145 = vmatpush2.msra.mxu0 0.0
  %1146 = vmatprep.subr.mxu0 0.0
  %1147 = vmatpush2.msra.mxu0 0.0
  %1148 = vmatprep.subr.mxu0 0.0
  %1149 = vmatpush2.msra.mxu0 0.0
  %1150 = vmatprep.subr.mxu0 0.0
  %1151 = vmatpush2.msra.mxu0 0.0
  %1152 = vmatprep.subr.mxu0 0.0
  %1153 = vmatpush2.msra.mxu0 0.0
  %1154 = vmatprep.subr.mxu0 0.0
  %1155 = vmatpush2.msra.mxu0 0.0
  %1156 = vmatprep.subr.mxu0 0.0
  %1157 = vmatpush2.msra.mxu0 0.0
  %1158 = vmatprep.subr.mxu0 0.0
  %1159 = vmatpush2.msra.mxu0 0.0
  %1160 = vmatprep.subr.mxu0 0.0
  %1161 = vmatpush2.msra.mxu0 0.0
  %1162 = vmatprep.subr.mxu0 0.0
  %1163 = vmatpush2.msra.mxu0 0.0
  %1164 = vmatprep.subr.mxu0 0.0
  %1165 = vmatpush2.msra.mxu0 0.0
  %1166 = vmatprep.subr.mxu0 0.0
  %1167 = vmatpush2.msra.mxu0 0.0
  %1168 = vmatprep.subr.mxu0 0.0
  %1169 = vmatpush2.msra.mxu0 0.0
  %1170 = vmatprep.subr.mxu0 0.0
  %1171 = vmatpush2.msra.mxu0 0.0
  %1172 = vmatprep.subr.mxu0 0.0
  %1173 = vmatpush2.msra.mxu0 0.0
  %1174 = vmatprep.mubr.f32.mxu0 0.0
  %1175 = vmatmul.mubr.f32.gmra.mxu0 %v1108
  %v1176 = vpop.f32.mrf.mxu0
  %v1177 = vadd.f32 0.0, %v1176
  %v1178 = vpop.f32.mrf.mxu0
  %1179 = vdwg.mxu0
  %v1180 = vadd.f32 %v1105, %v1177
  %v1181 = vxor.u32 %v1180, 2147483648
  %v1182 = vmul.f32 %v1181, 1.442695
  %v1183 = vpow.pop %v1182
  %v1184 = vadd.f32 %v1183, 1.0
  %v1185 = vrcp.pop %v1184
  %v1186 = vmul.f32 1.0, %v1185
  %v1187 = vtanh.pop %v1180
  %v1188 = vmul.f32 %v1186, 0.0
  %1190 = vrot.lane.b32.xlu0 %v1187, 32
  %v1191 = vpop.permute.xlu0 %1190
  %v1193 = vmul.f32 %v1186, %v1191
  %1195 = vrot.lane.b32.xlu0 %v1193, 32
  %v1196 = vpop.permute.xlu0 %1195
  %v1198 = vadd.f32 %v1188, %v1196
  %v1199 = vtanh.pop %v1198
  %1201 = vrot.lane.b32.xlu0 %v1199, 32
  %v1202 = vpop.permute.xlu0 %1201
  %v1204 = vmul.f32 %v1186, %v1202
  %1206 = vrot.lane.b32.xlu0 %v1204, 64
  %v1207 = vpop.permute.xlu0 %1206
  %v1208 = vsel %vm85, %v1207, 0
  %1210 = vmatprep.subr.mxu0 0.0
  %1211 = vmatpush1.msra.mxu0 0.0
  %1212 = vmatprep.subr.mxu0 0.0
  %1213 = vmatpush1.msra.mxu0 0.0
  %1214 = vmatprep.subr.mxu0 0.0
  %1215 = vmatpush1.msra.mxu0 0.0
  %1216 = vmatprep.subr.mxu0 0.0
  %1217 = vmatpush1.msra.mxu0 0.0
  %1218 = vmatprep.subr.mxu0 0.0
  %1219 = vmatpush1.msra.mxu0 0.0
  %1220 = vmatprep.subr.mxu0 0.0
  %1221 = vmatpush1.msra.mxu0 0.0
  %1222 = vmatprep.subr.mxu0 0.0
  %1223 = vmatpush1.msra.mxu0 0.0
  %1224 = vmatprep.subr.mxu0 0.0
  %1225 = vmatpush1.msra.mxu0 0.0
  %1226 = vmatprep.subr.mxu0 0.0
  %1227 = vmatpush1.msra.mxu0 0.0
  %1228 = vmatprep.subr.mxu0 0.0
  %1229 = vmatpush1.msra.mxu0 0.0
  %1230 = vmatprep.subr.mxu0 0.0
  %1231 = vmatpush1.msra.mxu0 0.0
  %1232 = vmatprep.subr.mxu0 0.0
  %1233 = vmatpush1.msra.mxu0 0.0
  %1234 = vmatprep.subr.mxu0 0.0
  %1235 = vmatpush1.msra.mxu0 %v1022
  %1236 = vmatprep.subr.mxu0 0.0
  %1237 = vmatpush1.msra.mxu0 %v1021
  %1238 = vmatprep.subr.mxu0 0.0
  %1239 = vmatpush1.msra.mxu0 %v1020
  %1240 = vmatprep.subr.mxu0 0.0
  %1241 = vmatpush1.msra.mxu0 %v1019
  %1242 = vmatprep.subr.mxu0 0.0
  %1243 = vmatpush2.msra.mxu0 0.0
  %1244 = vmatprep.subr.mxu0 0.0
  %1245 = vmatpush2.msra.mxu0 0.0
  %1246 = vmatprep.subr.mxu0 0.0
  %1247 = vmatpush2.msra.mxu0 0.0
  %1248 = vmatprep.subr.mxu0 0.0
  %1249 = vmatpush2.msra.mxu0 0.0
  %1250 = vmatprep.subr.mxu0 0.0
  %1251 = vmatpush2.msra.mxu0 0.0
  %1252 = vmatprep.subr.mxu0 0.0
  %1253 = vmatpush2.msra.mxu0 0.0
  %1254 = vmatprep.subr.mxu0 0.0
  %1255 = vmatpush2.msra.mxu0 0.0
  %1256 = vmatprep.subr.mxu0 0.0
  %1257 = vmatpush2.msra.mxu0 0.0
  %1258 = vmatprep.subr.mxu0 0.0
  %1259 = vmatpush2.msra.mxu0 0.0
  %1260 = vmatprep.subr.mxu0 0.0
  %1261 = vmatpush2.msra.mxu0 0.0
  %1262 = vmatprep.subr.mxu0 0.0
  %1263 = vmatpush2.msra.mxu0 0.0
  %1264 = vmatprep.subr.mxu0 0.0
  %1265 = vmatpush2.msra.mxu0 0.0
  %1266 = vmatprep.subr.mxu0 0.0
  %1267 = vmatpush2.msra.mxu0 0.0
  %1268 = vmatprep.subr.mxu0 0.0
  %1269 = vmatpush2.msra.mxu0 0.0
  %1270 = vmatprep.subr.mxu0 0.0
  %1271 = vmatpush2.msra.mxu0 0.0
  %1272 = vmatprep.subr.mxu0 0.0
  %1273 = vmatpush2.msra.mxu0 0.0
  %1274 = vmatprep.mubr.f32.mxu0 0.0
  %1275 = vmatmul.mubr.f32.gmra.mxu0 %v1208
  %v1276 = vpop.f32.mrf.mxu0
  %v1277 = vadd.f32 0.0, %v1276
  %v1278 = vpop.f32.mrf.mxu0
  %1279 = vdwg.mxu0
  %v1281 = vrot.slane %v1277, 6
  %v1283 = vadd.f32 %v1105, %v1281
  %v1284 = vxor.u32 %v1283, 2147483648
  %v1285 = vmul.f32 %v1284, 1.442695
  %v1286 = vpow.pop %v1285
  %v1287 = vadd.f32 %v1286, 1.0
  %v1288 = vrcp.pop %v1287
  %v1289 = vmul.f32 1.0, %v1288
  %v1290 = vtanh.pop %v1283
  %v1292 = vrot.slane %v1198, 6
  %v1294 = vmul.f32 %v1289, %v1292
  %1296 = vrot.lane.b32.xlu0 %v1290, 32
  %v1297 = vpop.permute.xlu0 %1296
  %v1299 = vmul.f32 %v1289, %v1297
  %1301 = vrot.lane.b32.xlu0 %v1299, 32
  %v1302 = vpop.permute.xlu0 %1301
  %v1304 = vadd.f32 %v1294, %v1302
  %v1305 = vtanh.pop %v1304
  %1307 = vrot.lane.b32.xlu0 %v1305, 32
  %v1308 = vpop.permute.xlu0 %1307
  %v1310 = vmul.f32 %v1289, %v1308
  %v1312 = vrot.slane %v1310, 2
  %1313 = vrot.lane.b32.xlu0 %v1312, 64
  %v1314 = vpop.permute.xlu0 %1313
  %v1315 = vsel %vm85, %v1314, 0
  %1317 = vmatprep.subr.mxu0 0.0
  %1318 = vmatpush1.msra.mxu0 0.0
  %1319 = vmatprep.subr.mxu0 0.0
  %1320 = vmatpush1.msra.mxu0 0.0
  %1321 = vmatprep.subr.mxu0 0.0
  %1322 = vmatpush1.msra.mxu0 0.0
  %1323 = vmatprep.subr.mxu0 0.0
  %1324 = vmatpush1.msra.mxu0 0.0
  %1325 = vmatprep.subr.mxu0 0.0
  %1326 = vmatpush1.msra.mxu0 0.0
  %1327 = vmatprep.subr.mxu0 0.0
  %1328 = vmatpush1.msra.mxu0 0.0
  %1329 = vmatprep.subr.mxu0 0.0
  %1330 = vmatpush1.msra.mxu0 0.0
  %1331 = vmatprep.subr.mxu0 0.0
  %1332 = vmatpush1.msra.mxu0 0.0
  %1333 = vmatprep.subr.mxu0 0.0
  %1334 = vmatpush1.msra.mxu0 0.0
  %1335 = vmatprep.subr.mxu0 0.0
  %1336 = vmatpush1.msra.mxu0 0.0
  %1337 = vmatprep.subr.mxu0 0.0
  %1338 = vmatpush1.msra.mxu0 0.0
  %1339 = vmatprep.subr.mxu0 0.0
  %1340 = vmatpush1.msra.mxu0 0.0
  %1341 = vmatprep.subr.mxu0 0.0
  %1342 = vmatpush1.msra.mxu0 %v1022
  %1343 = vmatprep.subr.mxu0 0.0
  %1344 = vmatpush1.msra.mxu0 %v1021
  %1345 = vmatprep.subr.mxu0 0.0
  %1346 = vmatpush1.msra.mxu0 %v1020
  %1347 = vmatprep.subr.mxu0 0.0
  %1348 = vmatpush1.msra.mxu0 %v1019
  %1349 = vmatprep.subr.mxu0 0.0
  %1350 = vmatpush2.msra.mxu0 0.0
  %1351 = vmatprep.subr.mxu0 0.0
  %1352 = vmatpush2.msra.mxu0 0.0
  %1353 = vmatprep.subr.mxu0 0.0
  %1354 = vmatpush2.msra.mxu0 0.0
  %1355 = vmatprep.subr.mxu0 0.0
  %1356 = vmatpush2.msra.mxu0 0.0
  %1357 = vmatprep.subr.mxu0 0.0
  %1358 = vmatpush2.msra.mxu0 0.0
  %1359 = vmatprep.subr.mxu0 0.0
  %1360 = vmatpush2.msra.mxu0 0.0
  %1361 = vmatprep.subr.mxu0 0.0
  %1362 = vmatpush2.msra.mxu0 0.0
  %1363 = vmatprep.subr.mxu0 0.0
  %1364 = vmatpush2.msra.mxu0 0.0
  %1365 = vmatprep.subr.mxu0 0.0
  %1366 = vmatpush2.msra.mxu0 0.0
  %1367 = vmatprep.subr.mxu0 0.0
  %1368 = vmatpush2.msra.mxu0 0.0
  %1369 = vmatprep.subr.mxu0 0.0
  %1370 = vmatpush2.msra.mxu0 0.0
  %1371 = vmatprep.subr.mxu0 0.0
  %1372 = vmatpush2.msra.mxu0 0.0
  %1373 = vmatprep.subr.mxu0 0.0
  %1374 = vmatpush2.msra.mxu0 0.0
  %1375 = vmatprep.subr.mxu0 0.0
  %1376 = vmatpush2.msra.mxu0 0.0
  %1377 = vmatprep.subr.mxu0 0.0
  %1378 = vmatpush2.msra.mxu0 0.0
  %1379 = vmatprep.subr.mxu0 0.0
  %1380 = vmatpush2.msra.mxu0 0.0
  %1381 = vmatprep.mubr.f32.mxu0 0.0
  %1382 = vmatmul.mubr.f32.gmra.mxu0 %v1315
  %v1383 = vpop.f32.mrf.mxu0
  %v1384 = vadd.f32 0.0, %v1383
  %v1385 = vpop.f32.mrf.mxu0
  %1386 = vdwg.mxu0
  %v1388 = vrot.slane %v1384, 4
  %v1390 = vadd.f32 %v1105, %v1388
  %v1391 = vxor.u32 %v1390, 2147483648
  %v1392 = vmul.f32 %v1391, 1.442695
  %v1393 = vpow.pop %v1392
  %v1394 = vadd.f32 %v1393, 1.0
  %v1395 = vrcp.pop %v1394
  %v1396 = vmul.f32 1.0, %v1395
  %v1397 = vtanh.pop %v1390
  %v1399 = vrot.slane %v1304, 6
  %v1401 = vmul.f32 %v1396, %v1399
  %1403 = vrot.lane.b32.xlu0 %v1397, 32
  %v1404 = vpop.permute.xlu0 %1403
  %v1406 = vmul.f32 %v1396, %v1404
  %1408 = vrot.lane.b32.xlu0 %v1406, 32
  %v1409 = vpop.permute.xlu0 %1408
  %v1411 = vadd.f32 %v1401, %v1409
  %v1412 = vtanh.pop %v1411
  %1414 = vrot.lane.b32.xlu0 %v1412, 32
  %v1415 = vpop.permute.xlu0 %1414
  %v1417 = vmul.f32 %v1396, %v1415
  %v1419 = vrot.slane %v1417, 4
  %1420 = vrot.lane.b32.xlu0 %v1419, 64
  %v1421 = vpop.permute.xlu0 %1420
  %v1422 = vsel %vm85, %v1421, 0
  %1424 = vmatprep.subr.mxu0 0.0
  %1425 = vmatpush1.msra.mxu0 0.0
  %1426 = vmatprep.subr.mxu0 0.0
  %1427 = vmatpush1.msra.mxu0 0.0
  %1428 = vmatprep.subr.mxu0 0.0
  %1429 = vmatpush1.msra.mxu0 0.0
  %1430 = vmatprep.subr.mxu0 0.0
  %1431 = vmatpush1.msra.mxu0 0.0
  %1432 = vmatprep.subr.mxu0 0.0
  %1433 = vmatpush1.msra.mxu0 0.0
  %1434 = vmatprep.subr.mxu0 0.0
  %1435 = vmatpush1.msra.mxu0 0.0
  %1436 = vmatprep.subr.mxu0 0.0
  %1437 = vmatpush1.msra.mxu0 0.0
  %1438 = vmatprep.subr.mxu0 0.0
  %1439 = vmatpush1.msra.mxu0 0.0
  %1440 = vmatprep.subr.mxu0 0.0
  %1441 = vmatpush1.msra.mxu0 0.0
  %1442 = vmatprep.subr.mxu0 0.0
  %1443 = vmatpush1.msra.mxu0 0.0
  %1444 = vmatprep.subr.mxu0 0.0
  %1445 = vmatpush1.msra.mxu0 0.0
  %1446 = vmatprep.subr.mxu0 0.0
  %1447 = vmatpush1.msra.mxu0 0.0
  %1448 = vmatprep.subr.mxu0 0.0
  %1449 = vmatpush1.msra.mxu0 %v1022
  %1450 = vmatprep.subr.mxu0 0.0
  %1451 = vmatpush1.msra.mxu0 %v1021
  %1452 = vmatprep.subr.mxu0 0.0
  %1453 = vmatpush1.msra.mxu0 %v1020
  %1454 = vmatprep.subr.mxu0 0.0
  %1455 = vmatpush1.msra.mxu0 %v1019
  %1456 = vmatprep.subr.mxu0 0.0
  %1457 = vmatpush2.msra.mxu0 0.0
  %1458 = vmatprep.subr.mxu0 0.0
  %1459 = vmatpush2.msra.mxu0 0.0
  %1460 = vmatprep.subr.mxu0 0.0
  %1461 = vmatpush2.msra.mxu0 0.0
  %1462 = vmatprep.subr.mxu0 0.0
  %1463 = vmatpush2.msra.mxu0 0.0
  %1464 = vmatprep.subr.mxu0 0.0
  %1465 = vmatpush2.msra.mxu0 0.0
  %1466 = vmatprep.subr.mxu0 0.0
  %1467 = vmatpush2.msra.mxu0 0.0
  %1468 = vmatprep.subr.mxu0 0.0
  %1469 = vmatpush2.msra.mxu0 0.0
  %1470 = vmatprep.subr.mxu0 0.0
  %1471 = vmatpush2.msra.mxu0 0.0
  %1472 = vmatprep.subr.mxu0 0.0
  %1473 = vmatpush2.msra.mxu0 0.0
  %1474 = vmatprep.subr.mxu0 0.0
  %1475 = vmatpush2.msra.mxu0 0.0
  %1476 = vmatprep.subr.mxu0 0.0
  %1477 = vmatpush2.msra.mxu0 0.0
  %1478 = vmatprep.subr.mxu0 0.0
  %1479 = vmatpush2.msra.mxu0 0.0
  %1480 = vmatprep.subr.mxu0 0.0
  %1481 = vmatpush2.msra.mxu0 0.0
  %1482 = vmatprep.subr.mxu0 0.0
  %1483 = vmatpush2.msra.mxu0 0.0
  %1484 = vmatprep.subr.mxu0 0.0
  %1485 = vmatpush2.msra.mxu0 0.0
  %1486 = vmatprep.subr.mxu0 0.0
  %1487 = vmatpush2.msra.mxu0 0.0
  %1488 = vmatprep.mubr.f32.mxu0 0.0
  %1489 = vmatmul.mubr.f32.gmra.mxu0 %v1422
  %v1490 = vpop.f32.mrf.mxu0
  %v1491 = vadd.f32 0.0, %v1490
  %v1492 = vpop.f32.mrf.mxu0
  %1493 = vdwg.mxu0
  %v1495 = vrot.slane %v1491, 2
  %v1497 = vadd.f32 %v1105, %v1495
  %v1498 = vxor.u32 %v1497, 2147483648
  %v1499 = vmul.f32 %v1498, 1.442695
  %v1500 = vpow.pop %v1499
  %v1501 = vadd.f32 %v1500, 1.0
  %v1502 = vrcp.pop %v1501
  %v1503 = vmul.f32 1.0, %v1502
  %v1504 = vtanh.pop %v1497
  %v1506 = vrot.slane %v1411, 6
  %v1508 = vmul.f32 %v1503, %v1506
  %1510 = vrot.lane.b32.xlu0 %v1504, 32
  %v1511 = vpop.permute.xlu0 %1510
  %v1513 = vmul.f32 %v1503, %v1511
  %1515 = vrot.lane.b32.xlu0 %v1513, 32
  %v1516 = vpop.permute.xlu0 %1515
  %v1518 = vadd.f32 %v1508, %v1516
  %v1519 = vtanh.pop %v1518
  %1521 = vrot.lane.b32.xlu0 %v1519, 32
  %v1522 = vpop.permute.xlu0 %1521
  %v1524 = vmul.f32 %v1503, %v1522
  %v1525 = vld [vmem:[%s1] sm:$0x3]
  %v1527 = vrot.slane %v1524, 6
  %vm1529 = vcmask 523264
  %v1530 = vsel %vm1529, %v1525, %v1527
  %v1531 = vld [vmem:[%s8] sm:$0xff]
  %v1532 = vld [vmem:[%s8 + $0x8] sm:$0xff]
  %v1533 = vld [vmem:[%s8 + $0x10] sm:$0xff]
  %v1534 = vld [vmem:[%s8 + $0x18] sm:$0xff]
  %v1535 = vld [vmem:[%s8 + $0x20] sm:$0xff]
  %v1536 = vld [vmem:[%s8 + $0x28] sm:$0xff]
  %v1537 = vld [vmem:[%s8 + $0x30] sm:$0xff]
  %v1538 = vld [vmem:[%s8 + $0x38] sm:$0xff]
  %v1539 = vld [vmem:[%s8 + $0x40] sm:$0xff]
  %v1540 = vld [vmem:[%s8 + $0x48] sm:$0xff]
  %v1541 = vld [vmem:[%s8 + $0x50] sm:$0xff]
  %v1542 = vld [vmem:[%s8 + $0x58] sm:$0xff]
  %v1543 = vld [vmem:[%s9] sm:$0x1]
  %v1545 = vlaneseq
  %v1546 = vshrl.u32 %v1545, 7
  %v1547 = vsub.s32 0, %v1546
  %v1548 = vrot.slane %v1543, %v1547
  %vm1550 = vcmask 785408
  %v1552 = vsel %vm1550, %v1530, 0
  %1554 = vmatprep.subr.mxu0 0.0
  %1555 = vmatpush1.msra.mxu0 0.0
  %1556 = vmatprep.subr.mxu0 0.0
  %1557 = vmatpush1.msra.mxu0 0.0
  %1558 = vmatprep.subr.mxu0 0.0
  %1559 = vmatpush1.msra.mxu0 0.0
  %1560 = vmatprep.subr.mxu0 0.0
  %1561 = vmatpush1.msra.mxu0 0.0
  %1562 = vmatprep.subr.mxu0 0.0
  %1563 = vmatpush1.msra.mxu0 %v1542
  %1564 = vmatprep.subr.mxu0 0.0
  %1565 = vmatpush1.msra.mxu0 %v1541
  %1566 = vmatprep.subr.mxu0 0.0
  %1567 = vmatpush1.msra.mxu0 %v1540
  %1568 = vmatprep.subr.mxu0 0.0
  %1569 = vmatpush1.msra.mxu0 %v1539
  %1570 = vmatprep.subr.mxu0 0.0
  %1571 = vmatpush1.msra.mxu0 %v1538
  %1572 = vmatprep.subr.mxu0 0.0
  %1573 = vmatpush1.msra.mxu0 %v1537
  %1574 = vmatprep.subr.mxu0 0.0
  %1575 = vmatpush1.msra.mxu0 %v1536
  %1576 = vmatprep.subr.mxu0 0.0
  %1577 = vmatpush1.msra.mxu0 %v1535
  %1578 = vmatprep.subr.mxu0 0.0
  %1579 = vmatpush1.msra.mxu0 %v1534
  %1580 = vmatprep.subr.mxu0 0.0
  %1581 = vmatpush1.msra.mxu0 %v1533
  %1582 = vmatprep.subr.mxu0 0.0
  %1583 = vmatpush1.msra.mxu0 %v1532
  %1584 = vmatprep.subr.mxu0 0.0
  %1585 = vmatpush1.msra.mxu0 %v1531
  %1586 = vmatprep.subr.mxu0 0.0
  %1587 = vmatpush2.msra.mxu0 0.0
  %1588 = vmatprep.subr.mxu0 0.0
  %1589 = vmatpush2.msra.mxu0 0.0
  %1590 = vmatprep.subr.mxu0 0.0
  %1591 = vmatpush2.msra.mxu0 0.0
  %1592 = vmatprep.subr.mxu0 0.0
  %1593 = vmatpush2.msra.mxu0 0.0
  %1594 = vmatprep.subr.mxu0 0.0
  %1595 = vmatpush2.msra.mxu0 0.0
  %1596 = vmatprep.subr.mxu0 0.0
  %1597 = vmatpush2.msra.mxu0 0.0
  %1598 = vmatprep.subr.mxu0 0.0
  %1599 = vmatpush2.msra.mxu0 0.0
  %1600 = vmatprep.subr.mxu0 0.0
  %1601 = vmatpush2.msra.mxu0 0.0
  %1602 = vmatprep.subr.mxu0 0.0
  %1603 = vmatpush2.msra.mxu0 0.0
  %1604 = vmatprep.subr.mxu0 0.0
  %1605 = vmatpush2.msra.mxu0 0.0
  %1606 = vmatprep.subr.mxu0 0.0
  %1607 = vmatpush2.msra.mxu0 0.0
  %1608 = vmatprep.subr.mxu0 0.0
  %1609 = vmatpush2.msra.mxu0 0.0
  %1610 = vmatprep.subr.mxu0 0.0
  %1611 = vmatpush2.msra.mxu0 0.0
  %1612 = vmatprep.subr.mxu0 0.0
  %1613 = vmatpush2.msra.mxu0 0.0
  %1614 = vmatprep.subr.mxu0 0.0
  %1615 = vmatpush2.msra.mxu0 0.0
  %1616 = vmatprep.subr.mxu0 0.0
  %1617 = vmatpush2.msra.mxu0 0.0
  %1618 = vmatprep.mubr.f32.mxu0 0.0
  %1619 = vmatmul.mubr.f32.gmra.mxu0 %v1552
  %v1620 = vpop.f32.mrf.mxu0
  %v1621 = vadd.f32 %v1548, %v1620
  %v1622 = vpop.f32.mrf.mxu0
  %1623 = vdwg.mxu0
  %vm1624 = vcmp.ge.f32.partialorder %v1621, 0.0
  %v1625 = vmul.f32 %v1621, 0.01
  %v1626 = vsel %vm1624, %v1621, %v1625
  %v1627 = vld [vmem:[%s10] sm:$0xff]
  %v1628 = vld [vmem:[%s10 + $0x8] sm:$0x1]
  %v1629 = vld [vmem:[%s11] sm:$0x1]
  %v1631 = vlaneseq
  %v1632 = vshrl.u32 %v1631, 7
  %v1633 = vsub.s32 0, %v1632
  %v1634 = vrot.slane %v1629, %v1633
  %vm1636 = vcmask 72704
  %v1638 = vsel %vm1636, %v1626, 0
  %vm1640 = vcmask 1040384
  %v1642 = vsel %vm1640, %v1628, 0
  %1644 = vmatprep.subr.mxu0 0.0
  %1645 = vmatpush1.msra.mxu0 0.0
  %1646 = vmatprep.subr.mxu0 0.0
  %1647 = vmatpush1.msra.mxu0 0.0
  %1648 = vmatprep.subr.mxu0 0.0
  %1649 = vmatpush1.msra.mxu0 0.0
  %1650 = vmatprep.subr.mxu0 0.0
  %1651 = vmatpush1.msra.mxu0 0.0
  %1652 = vmatprep.subr.mxu0 0.0
  %1653 = vmatpush1.msra.mxu0 0.0
  %1654 = vmatprep.subr.mxu0 0.0
  %1655 = vmatpush1.msra.mxu0 0.0
  %1656 = vmatprep.subr.mxu0 0.0
  %1657 = vmatpush1.msra.mxu0 0.0
  %1658 = vmatprep.subr.mxu0 0.0
  %1659 = vmatpush1.msra.mxu0 0.0
  %1660 = vmatprep.subr.mxu0 0.0
  %1661 = vmatpush1.msra.mxu0 0.0
  %1662 = vmatprep.subr.mxu0 0.0
  %1663 = vmatpush1.msra.mxu0 0.0
  %1664 = vmatprep.subr.mxu0 0.0
  %1665 = vmatpush1.msra.mxu0 0.0
  %1666 = vmatprep.subr.mxu0 0.0
  %1667 = vmatpush1.msra.mxu0 0.0
  %1668 = vmatprep.subr.mxu0 0.0
  %1669 = vmatpush1.msra.mxu0 0.0
  %1670 = vmatprep.subr.mxu0 0.0
  %1671 = vmatpush1.msra.mxu0 0.0
  %1672 = vmatprep.subr.mxu0 0.0
  %1673 = vmatpush1.msra.mxu0 %v1642
  %1674 = vmatprep.subr.mxu0 0.0
  %1675 = vmatpush1.msra.mxu0 %v1627
  %1676 = vmatprep.subr.mxu0 0.0
  %1677 = vmatpush2.msra.mxu0 0.0
  %1678 = vmatprep.subr.mxu0 0.0
  %1679 = vmatpush2.msra.mxu0 0.0
  %1680 = vmatprep.subr.mxu0 0.0
  %1681 = vmatpush2.msra.mxu0 0.0
  %1682 = vmatprep.subr.mxu0 0.0
  %1683 = vmatpush2.msra.mxu0 0.0
  %1684 = vmatprep.subr.mxu0 0.0
  %1685 = vmatpush2.msra.mxu0 0.0
  %1686 = vmatprep.subr.mxu0 0.0
  %1687 = vmatpush2.msra.mxu0 0.0
  %1688 = vmatprep.subr.mxu0 0.0
  %1689 = vmatpush2.msra.mxu0 0.0
  %1690 = vmatprep.subr.mxu0 0.0
  %1691 = vmatpush2.msra.mxu0 0.0
  %1692 = vmatprep.subr.mxu0 0.0
  %1693 = vmatpush2.msra.mxu0 0.0
  %1694 = vmatprep.subr.mxu0 0.0
  %1695 = vmatpush2.msra.mxu0 0.0
  %1696 = vmatprep.subr.mxu0 0.0
  %1697 = vmatpush2.msra.mxu0 0.0
  %1698 = vmatprep.subr.mxu0 0.0
  %1699 = vmatpush2.msra.mxu0 0.0
  %1700 = vmatprep.subr.mxu0 0.0
  %1701 = vmatpush2.msra.mxu0 0.0
  %1702 = vmatprep.subr.mxu0 0.0
  %1703 = vmatpush2.msra.mxu0 0.0
  %1704 = vmatprep.subr.mxu0 0.0
  %1705 = vmatpush2.msra.mxu0 0.0
  %1706 = vmatprep.subr.mxu0 0.0
  %1707 = vmatpush2.msra.mxu0 0.0
  %1708 = vmatprep.mubr.f32.mxu0 0.0
  %1709 = vmatmul.mubr.f32.gmra.mxu0 %v1638
  %v1710 = vpop.f32.mrf.mxu0
  %v1711 = vadd.f32 %v1634, %v1710
  %v1712 = vpop.f32.mrf.mxu0
  %1713 = vdwg.mxu0
  %v1714 = vlaneseq
  %v1715 = vand.u32 %v1714, 127
  %vm1716 = vcmp.eq.s32.totalorder %v1715, 10
  %v1717 = vxor.u32 %v1711, 2147483648
  %v1718 = vmul.f32 %v1717, 1.442695
  %v1719 = vpow.pop %v1718
  %v1720 = vadd.f32 %v1719, 1.0
  %v1721 = vrcp.pop %v1720
  %v1722 = vmul.f32 1.0, %v1721
  %v1723 = vmul.f32 %v1722, 150.0
  %v1724 = vadd.f32 %v1723, 50.0
  %v1725 = vsel %vm1716, %v1724, %v1711
  %1726 = vst [vmem:[%s12] sm:$0x3] %v1725
  // Predicated region
  $region50: #{song_info_forward.1} parent=0 // pred_check
    _
  $region51: #{song_info_forward.1} parent=0 // pred_check_branch
    %1728 = sbr.rel (0) target = $region53
  $region52: #{song_info_forward.1} parent=0 // pred_region
    _
  $region53: #{song_info_forward.1} parent=0 // pred_fallthru
    _
  // Predicated region
  $region54: #{song_info_forward.1} parent=0 // pred_check
    _
  $region55: #{song_info_forward.1} parent=0 // pred_check_branch
    %1730 = sbr.rel (0) target = $region57
  $region56: #{song_info_forward.1} parent=0 // pred_region
    _
  $region57: #{song_info_forward.1} parent=0 // pred_fallthru
    _

</llo_original>
